<compile_context>
chip_gen: v7x
topology: tpu7x:2x2x1
jax: 0.10.0
libtpu: 0.0.40
codegen_flags: <defaults>
</compile_context>

<pallas_src>
import jax
import jax.numpy as jnp
from jax import lax
from jax.experimental import pallas as pl
from jax.experimental.pallas import tpu as pltpu

_LANES = 128


def _round_up(x, m):
    return ((x + m - 1) // m) * m


def _pad2(a, rows, cols):
    r, c = a.shape
    return jnp.pad(a, ((0, rows - r), (0, cols - c)))


def _temporal_link_kernel(
    xs_ref, xd_ref,              # [TM, F] src / dst feature tiles (real F, no lane padding)
    wbb_ref, bbb_ref,            # backbone: [F, Dp], [1, Dp]
    w1a_ref, w1b_ref, b1_ref,    # fc1 split: [Dp, Dp] (src half), [Dp, Dp] (dst half), [1, Dp]
    w2_ref, b2_ref,              # fc2: [1, Dp] (row layout, f32), [1, 1]
    out_ref,                     # [1, TM] lane-dense link scores
):
    f32 = jnp.float32
    mm_dtype = w1a_ref.dtype             # f32 or bf16 matmul inputs; accumulation always f32

    # ---- dynamic_backbone stand-in: two plain MXU matmuls sharing the resident weight ----
    hs = jnp.dot(xs_ref[...], wbb_ref[...], preferred_element_type=f32) + bbb_ref[...]
    hd = jnp.dot(xd_ref[...], wbb_ref[...], preferred_element_type=f32) + bbb_ref[...]
    hs = jnp.maximum(hs, 0.0)                                              # ReLU in f32
    hd = jnp.maximum(hd, 0.0)

    # ---- MergeLayer.fc1 on concat([hs, hd], -1): split matmul (no lane concat) ----
    h = (jnp.dot(hs.astype(mm_dtype), w1a_ref[...], preferred_element_type=f32)
         + jnp.dot(hd.astype(mm_dtype), w1b_ref[...], preferred_element_type=f32)
         + b1_ref[...])
    h = jnp.maximum(h, 0.0)                                                # MergeLayer ReLU

    # ---- MergeLayer.fc2 (D -> 1): contract last dims (trans_b form, no materialized h.T) ----
    s = lax.dot_general(w2_ref[...], h, (((1,), (1,)), ((), ())),
                        preferred_element_type=f32) + b2_ref[...]          # [1, TM]
    out_ref[...] = s.astype(out_ref.dtype)


def temporal_link_forward(x_src, x_dst, params, *, tile_rows=1024, use_bf16=False):
    """Fused forward pass. x_src/x_dst: [N, F] float32. Returns [N, 1] f32 link scores."""
    N, F = x_src.shape
    D = params["w_bb"].shape[1]
    Dp = _round_up(D, _LANES)

    tm = min(_round_up(tile_rows, _LANES), _round_up(N, _LANES))   # row tile (multiple of 128)
    n_pad = _round_up(N, tm)
    grid = (n_pad // tm,)

    # bf16 matmul inputs are fine on all generations (v5e's MXU is natively bf16); only the
    # biases / ReLU / fc2, which stay f32 here, would need the VPU/EUP bf16 path.
    mm_dtype = jnp.bfloat16 if use_bf16 else jnp.float32

    # Row-pad only; the feature dim keeps its real size F (block spans the full last dim).
    xs = jnp.pad(x_src, ((0, n_pad - N), (0, 0))).astype(mm_dtype)
    xd = jnp.pad(x_dst, ((0, n_pad - N), (0, 0))).astype(mm_dtype)
    # Zero padding of the weights' OUTPUT dims keeps the math exact: padded embedding columns are
    # ReLU(0) = 0 and contribute nothing downstream.
    w_bb = _pad2(params["w_bb"], F, Dp).astype(mm_dtype)           # contraction dim stays F
    b_bb = _pad2(params["b_bb"], 1, Dp)
    w1a = _pad2(params["w1_src"], Dp, Dp).astype(mm_dtype)
    w1b = _pad2(params["w1_dst"], Dp, Dp).astype(mm_dtype)
    b1 = _pad2(params["b1"], 1, Dp)
    w2r = _pad2(params["w2"].reshape(1, D), 1, Dp)                 # fc2 weight as an f32 row
    b2 = params["b2"]                                              # [1, 1] f32

    # VMEM budget from actual buffer bytes + tm-scaled temporaries (hs/hd/h + matmul temps),
    # plus a small fixed margin for compiler scratch.  No hard-coded 48 MiB cap (v7x-safe).
    in_isz = jnp.dtype(mm_dtype).itemsize
    weight_bytes = (F * Dp + 2 * Dp * Dp) * in_isz + (2 * Dp + Dp + 1) * 4
    buf_bytes = (2 * 2 * tm * F * in_isz       # double-buffered x_src/x_dst tiles
                 + 2 * weight_bytes            # resident weights (conservatively doubled)
                 + 2 * tm * 4)                 # double-buffered (1, tm) f32 output
    temp_bytes = 6 * tm * Dp * 4               # hs, hd, h and matmul temporaries (scales with tm)
    vmem_limit = int(buf_bytes + temp_bytes + (4 << 20))

    const = lambda shape: pl.BlockSpec(shape, lambda i: (0,) * len(shape))

    out_pad = pl.pallas_call(
        _temporal_link_kernel,
        out_shape=jax.ShapeDtypeStruct((1, n_pad), jnp.float32),
        grid_spec=pl.GridSpec(
            grid=grid,
            in_specs=[
                pl.BlockSpec((tm, F), lambda i: (i, 0)),            # x_src row tile (pipelined)
                pl.BlockSpec((tm, F), lambda i: (i, 0)),            # x_dst row tile (pipelined)
                const((F, Dp)), const((1, Dp)),                     # backbone (VMEM-resident)
                const((Dp, Dp)), const((Dp, Dp)), const((1, Dp)),   # fc1 (VMEM-resident)
                const((1, Dp)), const((1, 1)),                      # fc2 (VMEM-resident)
            ],
            out_specs=pl.BlockSpec((1, tm), lambda i: (0, i)),      # lane-dense score row
        ),
        compiler_params=pltpu.CompilerParams(
            dimension_semantics=("parallel",),                      # row tiles are independent
            vmem_limit_bytes=vmem_limit,
        ),
    )(xs, xd, w_bb, b_bb, w1a, w1b, b1, w2r, b2)

    return out_pad[0, :N].reshape(N, 1)


def init_params(key, feat_dim, output_dim):
    """Deterministic parameter init. Weights already in [in, out] layout for the kernel."""
    k = jax.random.split(key, 6)
    scale = 0.1
    w_bb = scale * jax.random.normal(k[0], (feat_dim, output_dim), jnp.float32)
    b_bb = scale * jax.random.normal(k[1], (1, output_dim), jnp.float32)
    # fc1: Linear(2*output_dim -> output_dim); split the [2D, D] weight into src/dst halves.
    w1 = scale * jax.random.normal(k[2], (2 * output_dim, output_dim), jnp.float32)
    b1 = scale * jax.random.normal(k[3], (1, output_dim), jnp.float32)
    # fc2: Linear(output_dim -> 1)
    w2 = scale * jax.random.normal(k[4], (output_dim, 1), jnp.float32)
    b2 = scale * jax.random.normal(k[5], (1, 1), jnp.float32)
    return {
        "w_bb": w_bb, "b_bb": b_bb,
        "w1_src": w1[:output_dim], "w1_dst": w1[output_dim:], "b1": b1,
        "w2": w2, "b2": b2,
    }


def reference_forward(x_src, x_dst, params):
    """Pure-JAX reference for correctness checking."""
    hs = jnp.maximum(x_src @ params["w_bb"] + params["b_bb"], 0.0)
    hd = jnp.maximum(x_dst @ params["w_bb"] + params["b_bb"], 0.0)
    z = jnp.concatenate([hs, hd], axis=1)
    w1 = jnp.concatenate([params["w1_src"], params["w1_dst"]], axis=0)
    h = jnp.maximum(z @ w1 + params["b1"], 0.0)
    return h @ params["w2"] + params["b2"]


if __name__ == "__main__":
    N = 300          # candidate links (row-padded to the clamped 384-row tile -> 1 grid step)
    F = 48           # raw node feature dim (kept as-is on the lane axis; no 128-padding of x)
    D = 32           # args.output_dim (weights' output dims lane-padded to 128 internally)

    key = jax.random.PRNGKey(0)
    kx1, kx2, kp = jax.random.split(key, 3)
    x_src = jax.random.normal(kx1, (N, F), jnp.float32)
    x_dst = jax.random.normal(kx2, (N, F), jnp.float32)
    params = init_params(kp, F, D)

    ref = reference_forward(x_src, x_dst, params)

    out = jax.block_until_ready(temporal_link_forward(x_src, x_dst, params))
    assert out.shape == (N, 1)
    assert jnp.allclose(out, ref, atol=5e-4, rtol=5e-4), "f32 kernel mismatch vs reference"

    # bf16 matmul inputs (valid on v5e/v6e/v7x), f32 accumulation -> looser tolerance since the
    # raw features themselves are rounded to bf16 before the backbone matmul.
    out_bf16 = jax.block_until_ready(
        temporal_link_forward(x_src, x_dst, params, use_bf16=True))
    assert out_bf16.shape == (N, 1)
    assert jnp.allclose(out_bf16, ref, atol=1e-1, rtol=1e-1), "bf16 kernel mismatch vs reference"

    print("KERNEL_OK")
</pallas_src>

<mosaic_0001>
module attributes {stable_mosaic.version = 11 : i64} {
  func.func @_temporal_link_kernel(%arg0: i32, %arg1: memref<384x48xf32, #tpu.memory_space<vmem>>, %arg2: memref<384x48xf32, #tpu.memory_space<vmem>>, %arg3: memref<48x128xf32, #tpu.memory_space<vmem>>, %arg4: memref<1x128xf32, #tpu.memory_space<vmem>>, %arg5: memref<128x128xf32, #tpu.memory_space<vmem>>, %arg6: memref<128x128xf32, #tpu.memory_space<vmem>>, %arg7: memref<1x128xf32, #tpu.memory_space<vmem>>, %arg8: memref<1x128xf32, #tpu.memory_space<vmem>>, %arg9: memref<1x1xf32, #tpu.memory_space<vmem>>, %arg10: memref<1x384xf32, #tpu.memory_space<vmem>>) attributes {dimension_semantics = [#tpu.dimension_semantics<parallel>], iteration_bounds = array<i64: 1>, scalar_prefetch = 0 : i64, scratch_operands = 0 : i64, tpu.core_type = #tpu.core_type<tc>, window_params = [{transform_indices = @transform_0, window_bounds = array<i64: 384, 48>}, {transform_indices = @transform_1, window_bounds = array<i64: 384, 48>}, {pipeline_mode = #tpu.pipeline_mode<synchronous>, transform_indices = @transform_2, window_bounds = array<i64: 48, 128>}, {pipeline_mode = #tpu.pipeline_mode<synchronous>, transform_indices = @transform_3, window_bounds = array<i64: 1, 128>}, {pipeline_mode = #tpu.pipeline_mode<synchronous>, transform_indices = @transform_4, window_bounds = array<i64: 128, 128>}, {pipeline_mode = #tpu.pipeline_mode<synchronous>, transform_indices = @transform_5, window_bounds = array<i64: 128, 128>}, {pipeline_mode = #tpu.pipeline_mode<synchronous>, transform_indices = @transform_6, window_bounds = array<i64: 1, 128>}, {pipeline_mode = #tpu.pipeline_mode<synchronous>, transform_indices = @transform_7, window_bounds = array<i64: 1, 128>}, {pipeline_mode = #tpu.pipeline_mode<synchronous>, transform_indices = @transform_8, window_bounds = array<i64: 1, 1>}, {transform_indices = @transform_9, window_bounds = array<i64: 1, 384>}]} {
    %c0 = arith.constant 0 : index
    %c0_0 = arith.constant 0 : index
    %0 = vector.load %arg1[%c0, %c0_0] : memref<384x48xf32, #tpu.memory_space<vmem>>, vector<384x48xf32>
    %c0_1 = arith.constant 0 : index
    %c0_2 = arith.constant 0 : index
    %1 = vector.load %arg3[%c0_1, %c0_2] : memref<48x128xf32, #tpu.memory_space<vmem>>, vector<48x128xf32>
    %cst = arith.constant dense<0.000000e+00> : vector<384x128xf32>
    %2 = tpu.matmul %0, %1, %cst {dimension_numbers = #tpu.dot_dimension_numbers<[1], [0], [0], [1], [0, 0, 1, 1], [], []>} : vector<384x48xf32>, vector<48x128xf32>, vector<384x128xf32> -> vector<384x128xf32>
    %c0_3 = arith.constant 0 : index
    %c0_4 = arith.constant 0 : index
    %3 = vector.load %arg4[%c0_3, %c0_4] : memref<1x128xf32, #tpu.memory_space<vmem>>, vector<1x128xf32>
    %4 = vector.broadcast %3 : vector<1x128xf32> to vector<384x128xf32>
    %5 = arith.addf %2, %4 : vector<384x128xf32>
    %c0_5 = arith.constant 0 : index
    %c0_6 = arith.constant 0 : index
    %6 = vector.load %arg2[%c0_5, %c0_6] : memref<384x48xf32, #tpu.memory_space<vmem>>, vector<384x48xf32>
    %c0_7 = arith.constant 0 : index
    %c0_8 = arith.constant 0 : index
    %7 = vector.load %arg3[%c0_7, %c0_8] : memref<48x128xf32, #tpu.memory_space<vmem>>, vector<48x128xf32>
    %cst_9 = arith.constant dense<0.000000e+00> : vector<384x128xf32>
    %8 = tpu.matmul %6, %7, %cst_9 {dimension_numbers = #tpu.dot_dimension_numbers<[1], [0], [0], [1], [0, 0, 1, 1], [], []>} : vector<384x48xf32>, vector<48x128xf32>, vector<384x128xf32> -> vector<384x128xf32>
    %c0_10 = arith.constant 0 : index
    %c0_11 = arith.constant 0 : index
    %9 = vector.load %arg4[%c0_10, %c0_11] : memref<1x128xf32, #tpu.memory_space<vmem>>, vector<1x128xf32>
    %10 = vector.broadcast %9 : vector<1x128xf32> to vector<384x128xf32>
    %11 = arith.addf %8, %10 : vector<384x128xf32>
    %cst_12 = arith.constant 0.000000e+00 : f32
    %12 = vector.broadcast %cst_12 : f32 to vector<384x128xf32>
    %13 = arith.maximumf %5, %12 : vector<384x128xf32>
    %cst_13 = arith.constant 0.000000e+00 : f32
    %14 = vector.broadcast %cst_13 : f32 to vector<384x128xf32>
    %15 = arith.maximumf %11, %14 : vector<384x128xf32>
    %c0_14 = arith.constant 0 : index
    %c0_15 = arith.constant 0 : index
    %16 = vector.load %arg5[%c0_14, %c0_15] : memref<128x128xf32, #tpu.memory_space<vmem>>, vector<128x128xf32>
    %cst_16 = arith.constant dense<0.000000e+00> : vector<384x128xf32>
    %17 = tpu.matmul %13, %16, %cst_16 {dimension_numbers = #tpu.dot_dimension_numbers<[1], [0], [0], [1], [0, 0, 1, 1], [], []>} : vector<384x128xf32>, vector<128x128xf32>, vector<384x128xf32> -> vector<384x128xf32>
    %c0_17 = arith.constant 0 : index
    %c0_18 = arith.constant 0 : index
    %18 = vector.load %arg6[%c0_17, %c0_18] : memref<128x128xf32, #tpu.memory_space<vmem>>, vector<128x128xf32>
    %cst_19 = arith.constant dense<0.000000e+00> : vector<384x128xf32>
    %19 = tpu.matmul %15, %18, %cst_19 {dimension_numbers = #tpu.dot_dimension_numbers<[1], [0], [0], [1], [0, 0, 1, 1], [], []>} : vector<384x128xf32>, vector<128x128xf32>, vector<384x128xf32> -> vector<384x128xf32>
    %20 = arith.addf %17, %19 : vector<384x128xf32>
    %c0_20 = arith.constant 0 : index
    %c0_21 = arith.constant 0 : index
    %21 = vector.load %arg7[%c0_20, %c0_21] : memref<1x128xf32, #tpu.memory_space<vmem>>, vector<1x128xf32>
    %22 = vector.broadcast %21 : vector<1x128xf32> to vector<384x128xf32>
    %23 = arith.addf %20, %22 : vector<384x128xf32>
    %cst_22 = arith.constant 0.000000e+00 : f32
    %24 = vector.broadcast %cst_22 : f32 to vector<384x128xf32>
    %25 = arith.maximumf %23, %24 : vector<384x128xf32>
    %c0_23 = arith.constant 0 : index
    %c0_24 = arith.constant 0 : index
    %26 = vector.load %arg8[%c0_23, %c0_24] : memref<1x128xf32, #tpu.memory_space<vmem>>, vector<1x128xf32>
    %cst_25 = arith.constant dense<0.000000e+00> : vector<1x384xf32>
    %27 = tpu.matmul %26, %25, %cst_25 {dimension_numbers = #tpu.dot_dimension_numbers<[1], [1], [0], [0], [0, 0, 1, 0], [], []>} : vector<1x128xf32>, vector<384x128xf32>, vector<1x384xf32> -> vector<1x384xf32>
    %c0_26 = arith.constant 0 : index
    %c0_27 = arith.constant 0 : index
    %28 = vector.load %arg9[%c0_26, %c0_27] : memref<1x1xf32, #tpu.memory_space<vmem>>, vector<1x1xf32>
    %29 = vector.broadcast %28 : vector<1x1xf32> to vector<1x384xf32>
    %30 = arith.addf %27, %29 : vector<1x384xf32>
    %c0_28 = arith.constant 0 : index
    %c0_29 = arith.constant 0 : index
    %31 = vector.load %arg10[%c0_28, %c0_29] : memref<1x384xf32, #tpu.memory_space<vmem>>, vector<1x384xf32>
    tpu.vector_store %arg10[%c0_28, %c0_29], %30 {strides = array<i32>} : memref<1x384xf32, #tpu.memory_space<vmem>>, vector<1x384xf32>,
    return
  }
  func.func @transform_0(%arg0: i32) -> (i32, i32) {
    %c0_i32 = arith.constant 0 : i32
    %c0_i32_0 = arith.constant 0 : i32
    return %arg0, %c0_i32 : i32, i32
  }
  func.func @transform_1(%arg0: i32) -> (i32, i32) {
    %c0_i32 = arith.constant 0 : i32
    %c0_i32_0 = arith.constant 0 : i32
    return %arg0, %c0_i32 : i32, i32
  }
  func.func @transform_2(%arg0: i32) -> (i32, i32) {
    %c0_i32 = arith.constant 0 : i32
    %c0_i32_0 = arith.constant 0 : i32
    %c0_i32_1 = arith.constant 0 : i32
    return %c0_i32, %c0_i32_0 : i32, i32
  }
  func.func @transform_3(%arg0: i32) -> (i32, i32) {
    %c0_i32 = arith.constant 0 : i32
    %c0_i32_0 = arith.constant 0 : i32
    %c0_i32_1 = arith.constant 0 : i32
    return %c0_i32, %c0_i32_0 : i32, i32
  }
  func.func @transform_4(%arg0: i32) -> (i32, i32) {
    %c0_i32 = arith.constant 0 : i32
    %c0_i32_0 = arith.constant 0 : i32
    %c0_i32_1 = arith.constant 0 : i32
    return %c0_i32, %c0_i32_0 : i32, i32
  }
  func.func @transform_5(%arg0: i32) -> (i32, i32) {
    %c0_i32 = arith.constant 0 : i32
    %c0_i32_0 = arith.constant 0 : i32
    %c0_i32_1 = arith.constant 0 : i32
    return %c0_i32, %c0_i32_0 : i32, i32
  }
  func.func @transform_6(%arg0: i32) -> (i32, i32) {
    %c0_i32 = arith.constant 0 : i32
    %c0_i32_0 = arith.constant 0 : i32
    %c0_i32_1 = arith.constant 0 : i32
    return %c0_i32, %c0_i32_0 : i32, i32
  }
  func.func @transform_7(%arg0: i32) -> (i32, i32) {
    %c0_i32 = arith.constant 0 : i32
    %c0_i32_0 = arith.constant 0 : i32
    %c0_i32_1 = arith.constant 0 : i32
    return %c0_i32, %c0_i32_0 : i32, i32
  }
  func.func @transform_8(%arg0: i32) -> (i32, i32) {
    %c0_i32 = arith.constant 0 : i32
    %c0_i32_0 = arith.constant 0 : i32
    %c0_i32_1 = arith.constant 0 : i32
    return %c0_i32, %c0_i32_0 : i32, i32
  }
  func.func @transform_9(%arg0: i32) -> (i32, i32) {
    %c0_i32 = arith.constant 0 : i32
    %c0_i32_0 = arith.constant 0 : i32
    return %c0_i32, %arg0 : i32, i32
  }
}

</mosaic_0001>

<llo_original>
// kernel: tpu_custom_call.1
$region0: #{tpu_custom_call.1}
  #allocation0 [shape = 'u32[]', space=smem, size = 0x4, offset = 0x4, fixed_abs, tag = 'smem constant byte address 0x4 - core index']
  #allocation1 [shape = 'u32[144,128]{1,0:T(1,128)}', space=vmem, size = 0x12000, scoped, tag = 'internal scratch']
  #allocation2 [shape = 'f32[1,1]{1,0:T(1,128)S(1)}', space=vmem, size = 0x200, scoped, tag = 'scoped memory for tpu_custom_call.1']
  %s0 = inlined_call_operand.vmem [shape: f32[384,48], index: 0, kind: input, shape index: {}]
  %s1 = inlined_call_operand.vmem [shape: f32[384,48], index: 1, kind: input, shape index: {}]
  %s2 = inlined_call_operand.vmem [shape: f32[48,128], index: 2, kind: input, shape index: {}]
  %s3 = inlined_call_operand.vmem [shape: f32[1,128], index: 3, kind: input, shape index: {}]
  %s4 = inlined_call_operand.vmem [shape: f32[128,128], index: 4, kind: input, shape index: {}]
  %s5 = inlined_call_operand.vmem [shape: f32[128,128], index: 5, kind: input, shape index: {}]
  %s6 = inlined_call_operand.vmem [shape: f32[1,128], index: 6, kind: input, shape index: {}]
  %s7 = inlined_call_operand.vmem [shape: f32[1,128], index: 7, kind: input, shape index: {}]
  %s8 = inlined_call_operand.<no memory space> [shape: f32[1,1], index: 8, kind: input, shape index: {}]
  %s9 = inlined_call_operand.hbm [shape: f32[1,384], index: 9, kind: output, shape index: {}]
  %s10 = sld [smem:[#allocation0]]
  $region46: #{tpu_custom_call.1} parent=0
    _
  %s12 = ssub.s32 1, %s10
  %s13 = scalar_select 0, %s12, %s10
  %v14 = vstv %s8
  %15 = vst [vmem:[#allocation2] sm:$0x1] %v14
  $region1: #{tpu_custom_call.1} parent=0
    #allocation3 [shape = 'u8[1536]{0}', space=vmem, size = 0x800, scoped, tag = 'output window, operand 0, single buffered']
    #allocation4 [shape = 's32[1]{0}', space=sflag, size = 0x4, scoped, tag = 'scoped memory for tpu_custom_call.1']
    %16 = vsyncpa [#allocation4], 0
    // Predicated region
    $region2: #{tpu_custom_call.1} parent=1 // pred_check
      _
    $region3: #{tpu_custom_call.1} parent=1 // pred_check_branch
      %18 = sbr.rel (0) target = $region5
    $region4: #{tpu_custom_call.1} parent=1 // pred_region
      _
    $region5: #{tpu_custom_call.1} parent=1 // pred_fallthru
      _
    // Predicated region
    $region6: #{tpu_custom_call.1} parent=1 // pred_check
      _
    $region7: #{tpu_custom_call.1} parent=1 // pred_check_branch
      %20 = sbr.rel (0) target = $region9
    $region8: #{tpu_custom_call.1} parent=1 // pred_region
      _
    $region9: #{tpu_custom_call.1} parent=1 // pred_fallthru
      _
    // Predicated region
    $region10: #{tpu_custom_call.1} parent=1 // pred_check
      _
    $region11: #{tpu_custom_call.1} parent=1 // pred_check_branch
      %22 = sbr.rel (0) target = $region13
    $region12: #{tpu_custom_call.1} parent=1 // pred_region
      _
    $region13: #{tpu_custom_call.1} parent=1 // pred_fallthru
      _
    // Predicated region
    $region14: #{tpu_custom_call.1} parent=1 // pred_check
      _
    $region15: #{tpu_custom_call.1} parent=1 // pred_check_branch
      %24 = sbr.rel (0) target = $region17
    $region16: #{tpu_custom_call.1} parent=1 // pred_region
      _
    $region17: #{tpu_custom_call.1} parent=1 // pred_fallthru
      _
    // Predicated region
    $region18: #{tpu_custom_call.1} parent=1 // pred_check
      _
    $region19: #{tpu_custom_call.1} parent=1 // pred_check_branch
      %26 = sbr.rel (0) target = $region21
    $region20: #{tpu_custom_call.1} parent=1 // pred_region
      _
    $region21: #{tpu_custom_call.1} parent=1 // pred_fallthru
      _
    // Predicated region
    $region22: #{tpu_custom_call.1} parent=1 // pred_check
      _
    $region23: #{tpu_custom_call.1} parent=1 // pred_check_branch
      %28 = sbr.rel (0) target = $region25
    $region24: #{tpu_custom_call.1} parent=1 // pred_region
      _
    $region25: #{tpu_custom_call.1} parent=1 // pred_fallthru
      _
    // Predicated region
    $region26: #{tpu_custom_call.1} parent=1 // pred_check
      _
    $region27: #{tpu_custom_call.1} parent=1 // pred_check_branch
      %30 = sbr.rel (0) target = $region29
    $region28: #{tpu_custom_call.1} parent=1 // pred_region
      _
    $region29: #{tpu_custom_call.1} parent=1 // pred_fallthru
      _
    // Predicated region
    $region30: #{tpu_custom_call.1} parent=1 // pred_check
      _
    $region31: #{tpu_custom_call.1} parent=1 // pred_check_branch
      %32 = sbr.rel (0) target = $region33
    $region32: #{tpu_custom_call.1} parent=1 // pred_region
      _
    $region33: #{tpu_custom_call.1} parent=1 // pred_fallthru
      _
    // Predicated region
    $region34: #{tpu_custom_call.1} parent=1 // pred_check
      _
    $region35: #{tpu_custom_call.1} parent=1 // pred_check_branch
      %34 = sbr.rel (0) target = $region37
    $region36: #{tpu_custom_call.1} parent=1 // pred_region
      _
    $region37: #{tpu_custom_call.1} parent=1 // pred_fallthru
      _
    %v35 = vld [vmem:[%s0] sm:$0xff]
    %v36 = vld [vmem:[%s0 + $0x8] sm:$0xff]
    %v37 = vld [vmem:[%s0 + $0x10] sm:$0xff]
    %v38 = vld [vmem:[%s0 + $0x18] sm:$0xff]
    %v39 = vld [vmem:[%s0 + $0x20] sm:$0xff]
    %v40 = vld [vmem:[%s0 + $0x28] sm:$0xff]
    %v41 = vld [vmem:[%s0 + $0x30] sm:$0xff]
    %v42 = vld [vmem:[%s0 + $0x38] sm:$0xff]
    %v43 = vld [vmem:[%s0 + $0x40] sm:$0xff]
    %v44 = vld [vmem:[%s0 + $0x48] sm:$0xff]
    %v45 = vld [vmem:[%s0 + $0x50] sm:$0xff]
    %v46 = vld [vmem:[%s0 + $0x58] sm:$0xff]
    %v47 = vld [vmem:[%s0 + $0x60] sm:$0xff]
    %v48 = vld [vmem:[%s0 + $0x68] sm:$0xff]
    %v49 = vld [vmem:[%s0 + $0x70] sm:$0xff]
    %v50 = vld [vmem:[%s0 + $0x78] sm:$0xff]
    %v51 = vld [vmem:[%s0 + $0x80] sm:$0xff]
    %v52 = vld [vmem:[%s0 + $0x88] sm:$0xff]
    %v53 = vld [vmem:[%s0 + $0x90] sm:$0xff]
    %v54 = vld [vmem:[%s0 + $0x98] sm:$0xff]
    %v55 = vld [vmem:[%s0 + $0xa0] sm:$0xff]
    %v56 = vld [vmem:[%s0 + $0xa8] sm:$0xff]
    %v57 = vld [vmem:[%s0 + $0xb0] sm:$0xff]
    %v58 = vld [vmem:[%s0 + $0xb8] sm:$0xff]
    %v59 = vld [vmem:[%s0 + $0xc0] sm:$0xff]
    %v60 = vld [vmem:[%s0 + $0xc8] sm:$0xff]
    %v61 = vld [vmem:[%s0 + $0xd0] sm:$0xff]
    %v62 = vld [vmem:[%s0 + $0xd8] sm:$0xff]
    %v63 = vld [vmem:[%s0 + $0xe0] sm:$0xff]
    %v64 = vld [vmem:[%s0 + $0xe8] sm:$0xff]
    %v65 = vld [vmem:[%s0 + $0xf0] sm:$0xff]
    %v66 = vld [vmem:[%s0 + $0xf8] sm:$0xff]
    %v67 = vld [vmem:[%s0 + $0x100] sm:$0xff]
    %v68 = vld [vmem:[%s0 + $0x108] sm:$0xff]
    %v69 = vld [vmem:[%s0 + $0x110] sm:$0xff]
    %v70 = vld [vmem:[%s0 + $0x118] sm:$0xff]
    %v71 = vld [vmem:[%s0 + $0x120] sm:$0xff]
    %v72 = vld [vmem:[%s0 + $0x128] sm:$0xff]
    %v73 = vld [vmem:[%s0 + $0x130] sm:$0xff]
    %v74 = vld [vmem:[%s0 + $0x138] sm:$0xff]
    %v75 = vld [vmem:[%s0 + $0x140] sm:$0xff]
    %v76 = vld [vmem:[%s0 + $0x148] sm:$0xff]
    %v77 = vld [vmem:[%s0 + $0x150] sm:$0xff]
    %v78 = vld [vmem:[%s0 + $0x158] sm:$0xff]
    %v79 = vld [vmem:[%s0 + $0x160] sm:$0xff]
    %v80 = vld [vmem:[%s0 + $0x168] sm:$0xff]
    %v81 = vld [vmem:[%s0 + $0x170] sm:$0xff]
    %v82 = vld [vmem:[%s0 + $0x178] sm:$0xff]
    %v83 = vld [vmem:[%s2] sm:$0xff]
    %v84 = vld [vmem:[%s2 + $0x8] sm:$0xff]
    %v85 = vld [vmem:[%s2 + $0x10] sm:$0xff]
    %v86 = vld [vmem:[%s2 + $0x18] sm:$0xff]
    %v87 = vld [vmem:[%s2 + $0x20] sm:$0xff]
    %v88 = vld [vmem:[%s2 + $0x28] sm:$0xff]
    %v89 = vld [vmem:[%s3] sm:$0x1]
    %v91 = vlaneseq
    %v92 = vshrl.u32 %v91, 7
    %v93 = vsub.s32 0, %v92
    %v94 = vrot.slane %v89, %v93
    %vm96 = vcmask 392192
    %v98 = vsel %vm96, %v35, 0
    %v101 = vsel %vm96, %v36, 0
    %v104 = vsel %vm96, %v37, 0
    %v107 = vsel %vm96, %v38, 0
    %v110 = vsel %vm96, %v39, 0
    %v113 = vsel %vm96, %v40, 0
    %v116 = vsel %vm96, %v41, 0
    %v119 = vsel %vm96, %v42, 0
    %v122 = vsel %vm96, %v43, 0
    %v125 = vsel %vm96, %v44, 0
    %v128 = vsel %vm96, %v45, 0
    %v131 = vsel %vm96, %v46, 0
    %v134 = vsel %vm96, %v47, 0
    %v137 = vsel %vm96, %v48, 0
    %v140 = vsel %vm96, %v49, 0
    %v143 = vsel %vm96, %v50, 0
    %v146 = vsel %vm96, %v51, 0
    %v149 = vsel %vm96, %v52, 0
    %v152 = vsel %vm96, %v53, 0
    %v155 = vsel %vm96, %v54, 0
    %v158 = vsel %vm96, %v55, 0
    %v161 = vsel %vm96, %v56, 0
    %v164 = vsel %vm96, %v57, 0
    %v167 = vsel %vm96, %v58, 0
    %v170 = vsel %vm96, %v59, 0
    %v173 = vsel %vm96, %v60, 0
    %v176 = vsel %vm96, %v61, 0
    %v179 = vsel %vm96, %v62, 0
    %v182 = vsel %vm96, %v63, 0
    %v185 = vsel %vm96, %v64, 0
    %v188 = vsel %vm96, %v65, 0
    %v191 = vsel %vm96, %v66, 0
    %v194 = vsel %vm96, %v67, 0
    %v197 = vsel %vm96, %v68, 0
    %v200 = vsel %vm96, %v69, 0
    %v203 = vsel %vm96, %v70, 0
    %v206 = vsel %vm96, %v71, 0
    %v209 = vsel %vm96, %v72, 0
    %v212 = vsel %vm96, %v73, 0
    %v215 = vsel %vm96, %v74, 0
    %v218 = vsel %vm96, %v75, 0
    %v221 = vsel %vm96, %v76, 0
    %v224 = vsel %vm96, %v77, 0
    %v227 = vsel %vm96, %v78, 0
    %v230 = vsel %vm96, %v79, 0
    %v233 = vsel %vm96, %v80, 0
    %v236 = vsel %vm96, %v81, 0
    %v239 = vsel %vm96, %v82, 0
    %241 = vmatprep.subr.mxu0 0.0
    %242 = vmatpush1.msra.mxu0 %v83
    %243 = vmatprep.subr.mxu0 0.0
    %244 = vmatpush1.msra.mxu0 %v84
    %245 = vmatprep.subr.mxu0 0.0
    %246 = vmatpush1.msra.mxu0 %v85
    %247 = vmatprep.subr.mxu0 0.0
    %248 = vmatpush1.msra.mxu0 %v86
    %249 = vmatprep.subr.mxu0 0.0
    %250 = vmatpush1.msra.mxu0 %v87
    %251 = vmatprep.subr.mxu0 0.0
    %252 = vmatpush1.msra.mxu0 %v88
    %253 = vmatprep.subr.mxu0 0.0
    %254 = vmatpush1.msra.mxu0 0.0
    %255 = vmatprep.subr.mxu0 0.0
    %256 = vmatpush1.msra.mxu0 0.0
    %257 = vmatprep.subr.mxu0 0.0
    %258 = vmatpush1.msra.mxu0 0.0
    %259 = vmatprep.subr.mxu0 0.0
    %260 = vmatpush1.msra.mxu0 0.0
    %261 = vmatprep.subr.mxu0 0.0
    %262 = vmatpush1.msra.mxu0 0.0
    %263 = vmatprep.subr.mxu0 0.0
    %264 = vmatpush1.msra.mxu0 0.0
    %265 = vmatprep.subr.mxu0 0.0
    %266 = vmatpush1.msra.mxu0 0.0
    %267 = vmatprep.subr.mxu0 0.0
    %268 = vmatpush1.msra.mxu0 0.0
    %269 = vmatprep.subr.mxu0 0.0
    %270 = vmatpush1.msra.mxu0 0.0
    %271 = vmatprep.subr.mxu0 0.0
    %272 = vmatpush1.msra.mxu0 0.0
    %273 = vmatprep.subr.mxu0 0.0
    %274 = vmatpush1.msra.mxu0 0.0
    %275 = vmatprep.subr.mxu0 0.0
    %276 = vmatpush1.msra.mxu0 0.0
    %277 = vmatprep.subr.mxu0 0.0
    %278 = vmatpush1.msra.mxu0 0.0
    %279 = vmatprep.subr.mxu0 0.0
    %280 = vmatpush1.msra.mxu0 0.0
    %281 = vmatprep.subr.mxu0 0.0
    %282 = vmatpush1.msra.mxu0 0.0
    %283 = vmatprep.subr.mxu0 0.0
    %284 = vmatpush1.msra.mxu0 0.0
    %285 = vmatprep.subr.mxu0 0.0
    %286 = vmatpush1.msra.mxu0 0.0
    %287 = vmatprep.subr.mxu0 0.0
    %288 = vmatpush1.msra.mxu0 0.0
    %289 = vmatprep.subr.mxu0 0.0
    %290 = vmatpush1.msra.mxu0 0.0
    %291 = vmatprep.subr.mxu0 0.0
    %292 = vmatpush1.msra.mxu0 0.0
    %293 = vmatprep.subr.mxu0 0.0
    %294 = vmatpush1.msra.mxu0 0.0
    %295 = vmatprep.subr.mxu0 0.0
    %296 = vmatpush1.msra.mxu0 0.0
    %297 = vmatprep.subr.mxu0 0.0
    %298 = vmatpush1.msra.mxu0 0.0
    %299 = vmatprep.subr.mxu0 0.0
    %300 = vmatpush1.msra.mxu0 0.0
    %301 = vmatprep.subr.mxu0 0.0
    %302 = vmatpush1.msra.mxu0 0.0
    %303 = vmatprep.subr.mxu0 0.0
    %304 = vmatpush1.msra.mxu0 0.0
    %305 = vmatprep.mubr.f32.mxu0 0.0
    %306 = vmatmul.mubr.f32.gmra.mrb[0].mxu0 %v98
    %v307 = vpop.f32.mrb[0].mxu0
    %v308 = vadd.f32 %v94, %v307
    %v309 = vpop.f32.mrb[0].mxu0
    %310 = vmatprep.mubr.f32.mxu0 0.0
    %311 = vmatmul.mubr.f32.gmra.mrb[0].mxu0 %v101
    %v312 = vpop.f32.mrb[0].mxu0
    %v313 = vadd.f32 %v94, %v312
    %v314 = vpop.f32.mrb[0].mxu0
    %315 = vmatprep.mubr.f32.mxu0 0.0
    %316 = vmatmul.mubr.f32.gmra.mrb[0].mxu0 %v104
    %v317 = vpop.f32.mrb[0].mxu0
    %v318 = vadd.f32 %v94, %v317
    %v319 = vpop.f32.mrb[0].mxu0
    %320 = vmatprep.mubr.f32.mxu0 0.0
    %321 = vmatmul.mubr.f32.gmra.mrb[0].mxu0 %v107
    %v322 = vpop.f32.mrb[0].mxu0
    %v323 = vadd.f32 %v94, %v322
    %v324 = vpop.f32.mrb[0].mxu0
    %325 = vmatprep.mubr.f32.mxu0 0.0
    %326 = vmatmul.mubr.f32.gmra.mrb[0].mxu0 %v110
    %v327 = vpop.f32.mrb[0].mxu0
    %v328 = vadd.f32 %v94, %v327
    %v329 = vpop.f32.mrb[0].mxu0
    %330 = vmatprep.mubr.f32.mxu0 0.0
    %331 = vmatmul.mubr.f32.gmra.mrb[0].mxu0 %v113
    %v332 = vpop.f32.mrb[0].mxu0
    %v333 = vadd.f32 %v94, %v332
    %v334 = vpop.f32.mrb[0].mxu0
    %335 = vmatprep.mubr.f32.mxu0 0.0
    %336 = vmatmul.mubr.f32.gmra.mrb[0].mxu0 %v116
    %v337 = vpop.f32.mrb[0].mxu0
    %v338 = vadd.f32 %v94, %v337
    %v339 = vpop.f32.mrb[0].mxu0
    %340 = vmatprep.mubr.f32.mxu0 0.0
    %341 = vmatmul.mubr.f32.gmra.mrb[0].mxu0 %v119
    %v342 = vpop.f32.mrb[0].mxu0
    %v343 = vadd.f32 %v94, %v342
    %v344 = vpop.f32.mrb[0].mxu0
    %345 = vmatprep.mubr.f32.mxu0 0.0
    %346 = vmatmul.mubr.f32.gmra.mrb[0].mxu0 %v122
    %v347 = vpop.f32.mrb[0].mxu0
    %v348 = vadd.f32 %v94, %v347
    %v349 = vpop.f32.mrb[0].mxu0
    %350 = vmatprep.mubr.f32.mxu0 0.0
    %351 = vmatmul.mubr.f32.gmra.mrb[0].mxu0 %v125
    %v352 = vpop.f32.mrb[0].mxu0
    %v353 = vadd.f32 %v94, %v352
    %v354 = vpop.f32.mrb[0].mxu0
    %355 = vmatprep.mubr.f32.mxu0 0.0
    %356 = vmatmul.mubr.f32.gmra.mrb[0].mxu0 %v128
    %v357 = vpop.f32.mrb[0].mxu0
    %v358 = vadd.f32 %v94, %v357
    %v359 = vpop.f32.mrb[0].mxu0
    %360 = vmatprep.mubr.f32.mxu0 0.0
    %361 = vmatmul.mubr.f32.gmra.mrb[0].mxu0 %v131
    %v362 = vpop.f32.mrb[0].mxu0
    %v363 = vadd.f32 %v94, %v362
    %v364 = vpop.f32.mrb[0].mxu0
    %365 = vmatprep.mubr.f32.mxu0 0.0
    %366 = vmatmul.mubr.f32.gmra.mrb[0].mxu0 %v134
    %v367 = vpop.f32.mrb[0].mxu0
    %v368 = vadd.f32 %v94, %v367
    %v369 = vpop.f32.mrb[0].mxu0
    %370 = vmatprep.mubr.f32.mxu0 0.0
    %371 = vmatmul.mubr.f32.gmra.mrb[0].mxu0 %v137
    %v372 = vpop.f32.mrb[0].mxu0
    %v373 = vadd.f32 %v94, %v372
    %v374 = vpop.f32.mrb[0].mxu0
    %375 = vmatprep.mubr.f32.mxu0 0.0
    %376 = vmatmul.mubr.f32.gmra.mrb[0].mxu0 %v140
    %v377 = vpop.f32.mrb[0].mxu0
    %v378 = vadd.f32 %v94, %v377
    %v379 = vpop.f32.mrb[0].mxu0
    %380 = vmatprep.mubr.f32.mxu0 0.0
    %381 = vmatmul.mubr.f32.gmra.mrb[0].mxu0 %v143
    %v382 = vpop.f32.mrb[0].mxu0
    %v383 = vadd.f32 %v94, %v382
    %v384 = vpop.f32.mrb[0].mxu0
    %385 = vmatprep.mubr.f32.mxu0 0.0
    %386 = vmatmul.mubr.f32.gmra.mrb[0].mxu0 %v146
    %v387 = vpop.f32.mrb[0].mxu0
    %v388 = vadd.f32 %v94, %v387
    %v389 = vpop.f32.mrb[0].mxu0
    %390 = vmatprep.mubr.f32.mxu0 0.0
    %391 = vmatmul.mubr.f32.gmra.mrb[0].mxu0 %v149
    %v392 = vpop.f32.mrb[0].mxu0
    %v393 = vadd.f32 %v94, %v392
    %v394 = vpop.f32.mrb[0].mxu0
    %395 = vmatprep.mubr.f32.mxu0 0.0
    %396 = vmatmul.mubr.f32.gmra.mrb[0].mxu0 %v152
    %v397 = vpop.f32.mrb[0].mxu0
    %v398 = vadd.f32 %v94, %v397
    %v399 = vpop.f32.mrb[0].mxu0
    %400 = vmatprep.mubr.f32.mxu0 0.0
    %401 = vmatmul.mubr.f32.gmra.mrb[0].mxu0 %v155
    %v402 = vpop.f32.mrb[0].mxu0
    %v403 = vadd.f32 %v94, %v402
    %v404 = vpop.f32.mrb[0].mxu0
    %405 = vmatprep.mubr.f32.mxu0 0.0
    %406 = vmatmul.mubr.f32.gmra.mrb[0].mxu0 %v158
    %v407 = vpop.f32.mrb[0].mxu0
    %v408 = vadd.f32 %v94, %v407
    %v409 = vpop.f32.mrb[0].mxu0
    %410 = vmatprep.mubr.f32.mxu0 0.0
    %411 = vmatmul.mubr.f32.gmra.mrb[0].mxu0 %v161
    %v412 = vpop.f32.mrb[0].mxu0
    %v413 = vadd.f32 %v94, %v412
    %v414 = vpop.f32.mrb[0].mxu0
    %415 = vmatprep.mubr.f32.mxu0 0.0
    %416 = vmatmul.mubr.f32.gmra.mrb[0].mxu0 %v164
    %v417 = vpop.f32.mrb[0].mxu0
    %v418 = vadd.f32 %v94, %v417
    %v419 = vpop.f32.mrb[0].mxu0
    %420 = vmatprep.mubr.f32.mxu0 0.0
    %421 = vmatmul.mubr.f32.gmra.mrb[0].mxu0 %v167
    %v422 = vpop.f32.mrb[0].mxu0
    %v423 = vadd.f32 %v94, %v422
    %v424 = vpop.f32.mrb[0].mxu0
    %425 = vmatprep.mubr.f32.mxu0 0.0
    %426 = vmatmul.mubr.f32.gmra.mrb[0].mxu0 %v170
    %v427 = vpop.f32.mrb[0].mxu0
    %v428 = vadd.f32 %v94, %v427
    %v429 = vpop.f32.mrb[0].mxu0
    %430 = vmatprep.mubr.f32.mxu0 0.0
    %431 = vmatmul.mubr.f32.gmra.mrb[0].mxu0 %v173
    %v432 = vpop.f32.mrb[0].mxu0
    %v433 = vadd.f32 %v94, %v432
    %v434 = vpop.f32.mrb[0].mxu0
    %435 = vmatprep.mubr.f32.mxu0 0.0
    %436 = vmatmul.mubr.f32.gmra.mrb[0].mxu0 %v176
    %v437 = vpop.f32.mrb[0].mxu0
    %v438 = vadd.f32 %v94, %v437
    %v439 = vpop.f32.mrb[0].mxu0
    %440 = vmatprep.mubr.f32.mxu0 0.0
    %441 = vmatmul.mubr.f32.gmra.mrb[0].mxu0 %v179
    %v442 = vpop.f32.mrb[0].mxu0
    %v443 = vadd.f32 %v94, %v442
    %v444 = vpop.f32.mrb[0].mxu0
    %445 = vmatprep.mubr.f32.mxu0 0.0
    %446 = vmatmul.mubr.f32.gmra.mrb[0].mxu0 %v182
    %v447 = vpop.f32.mrb[0].mxu0
    %v448 = vadd.f32 %v94, %v447
    %v449 = vpop.f32.mrb[0].mxu0
    %450 = vmatprep.mubr.f32.mxu0 0.0
    %451 = vmatmul.mubr.f32.gmra.mrb[0].mxu0 %v185
    %v452 = vpop.f32.mrb[0].mxu0
    %v453 = vadd.f32 %v94, %v452
    %v454 = vpop.f32.mrb[0].mxu0
    %455 = vmatprep.mubr.f32.mxu0 0.0
    %456 = vmatmul.mubr.f32.gmra.mrb[0].mxu0 %v188
    %v457 = vpop.f32.mrb[0].mxu0
    %v458 = vadd.f32 %v94, %v457
    %v459 = vpop.f32.mrb[0].mxu0
    %460 = vmatprep.mubr.f32.mxu0 0.0
    %461 = vmatmul.mubr.f32.gmra.mrb[0].mxu0 %v191
    %v462 = vpop.f32.mrb[0].mxu0
    %v463 = vadd.f32 %v94, %v462
    %v464 = vpop.f32.mrb[0].mxu0
    %465 = vmatprep.mubr.f32.mxu0 0.0
    %466 = vmatmul.mubr.f32.gmra.mrb[0].mxu0 %v194
    %v467 = vpop.f32.mrb[0].mxu0
    %v468 = vadd.f32 %v94, %v467
    %v469 = vpop.f32.mrb[0].mxu0
    %470 = vmatprep.mubr.f32.mxu0 0.0
    %471 = vmatmul.mubr.f32.gmra.mrb[0].mxu0 %v197
    %v472 = vpop.f32.mrb[0].mxu0
    %v473 = vadd.f32 %v94, %v472
    %v474 = vpop.f32.mrb[0].mxu0
    %475 = vmatprep.mubr.f32.mxu0 0.0
    %476 = vmatmul.mubr.f32.gmra.mrb[0].mxu0 %v200
    %v477 = vpop.f32.mrb[0].mxu0
    %v478 = vadd.f32 %v94, %v477
    %v479 = vpop.f32.mrb[0].mxu0
    %480 = vmatprep.mubr.f32.mxu0 0.0
    %481 = vmatmul.mubr.f32.gmra.mrb[0].mxu0 %v203
    %v482 = vpop.f32.mrb[0].mxu0
    %v483 = vadd.f32 %v94, %v482
    %v484 = vpop.f32.mrb[0].mxu0
    %485 = vmatprep.mubr.f32.mxu0 0.0
    %486 = vmatmul.mubr.f32.gmra.mrb[0].mxu0 %v206
    %v487 = vpop.f32.mrb[0].mxu0
    %v488 = vadd.f32 %v94, %v487
    %v489 = vpop.f32.mrb[0].mxu0
    %490 = vmatprep.mubr.f32.mxu0 0.0
    %491 = vmatmul.mubr.f32.gmra.mrb[0].mxu0 %v209
    %v492 = vpop.f32.mrb[0].mxu0
    %v493 = vadd.f32 %v94, %v492
    %v494 = vpop.f32.mrb[0].mxu0
    %495 = vmatprep.mubr.f32.mxu0 0.0
    %496 = vmatmul.mubr.f32.gmra.mrb[0].mxu0 %v212
    %v497 = vpop.f32.mrb[0].mxu0
    %v498 = vadd.f32 %v94, %v497
    %v499 = vpop.f32.mrb[0].mxu0
    %500 = vmatprep.mubr.f32.mxu0 0.0
    %501 = vmatmul.mubr.f32.gmra.mrb[0].mxu0 %v215
    %v502 = vpop.f32.mrb[0].mxu0
    %v503 = vadd.f32 %v94, %v502
    %v504 = vpop.f32.mrb[0].mxu0
    %505 = vmatprep.mubr.f32.mxu0 0.0
    %506 = vmatmul.mubr.f32.gmra.mrb[0].mxu0 %v218
    %v507 = vpop.f32.mrb[0].mxu0
    %v508 = vadd.f32 %v94, %v507
    %v509 = vpop.f32.mrb[0].mxu0
    %510 = vmatprep.mubr.f32.mxu0 0.0
    %511 = vmatmul.mubr.f32.gmra.mrb[0].mxu0 %v221
    %v512 = vpop.f32.mrb[0].mxu0
    %v513 = vadd.f32 %v94, %v512
    %v514 = vpop.f32.mrb[0].mxu0
    %515 = vmatprep.mubr.f32.mxu0 0.0
    %516 = vmatmul.mubr.f32.gmra.mrb[0].mxu0 %v224
    %v517 = vpop.f32.mrb[0].mxu0
    %v518 = vadd.f32 %v94, %v517
    %v519 = vpop.f32.mrb[0].mxu0
    %520 = vmatprep.mubr.f32.mxu0 0.0
    %521 = vmatmul.mubr.f32.gmra.mrb[0].mxu0 %v227
    %v522 = vpop.f32.mrb[0].mxu0
    %v523 = vadd.f32 %v94, %v522
    %v524 = vpop.f32.mrb[0].mxu0
    %525 = vmatprep.mubr.f32.mxu0 0.0
    %526 = vmatmul.mubr.f32.gmra.mrb[0].mxu0 %v230
    %v527 = vpop.f32.mrb[0].mxu0
    %v528 = vadd.f32 %v94, %v527
    %v529 = vpop.f32.mrb[0].mxu0
    %530 = vmatprep.mubr.f32.mxu0 0.0
    %531 = vmatmul.mubr.f32.gmra.mrb[0].mxu0 %v233
    %v532 = vpop.f32.mrb[0].mxu0
    %v533 = vadd.f32 %v94, %v532
    %v534 = vpop.f32.mrb[0].mxu0
    %535 = vmatprep.mubr.f32.mxu0 0.0
    %536 = vmatmul.mubr.f32.gmra.mrb[0].mxu0 %v236
    %v537 = vpop.f32.mrb[0].mxu0
    %v538 = vadd.f32 %v94, %v537
    %v539 = vpop.f32.mrb[0].mxu0
    %540 = vmatprep.mubr.f32.mxu0 0.0
    %541 = vmatmul.mubr.f32.gmra.mrb[0].mxu0 %v239
    %v542 = vpop.f32.mrb[0].mxu0
    %v543 = vadd.f32 %v94, %v542
    %v544 = vpop.f32.mrb[0].mxu0
    %545 = vdwg.mxu0
    %v546 = vld [vmem:[%s1] sm:$0xff]
    %v547 = vld [vmem:[%s1 + $0x8] sm:$0xff]
    %v548 = vld [vmem:[%s1 + $0x10] sm:$0xff]
    %v549 = vld [vmem:[%s1 + $0x18] sm:$0xff]
    %v550 = vld [vmem:[%s1 + $0x20] sm:$0xff]
    %v551 = vld [vmem:[%s1 + $0x28] sm:$0xff]
    %v552 = vld [vmem:[%s1 + $0x30] sm:$0xff]
    %v553 = vld [vmem:[%s1 + $0x38] sm:$0xff]
    %v554 = vld [vmem:[%s1 + $0x40] sm:$0xff]
    %v555 = vld [vmem:[%s1 + $0x48] sm:$0xff]
    %v556 = vld [vmem:[%s1 + $0x50] sm:$0xff]
    %v557 = vld [vmem:[%s1 + $0x58] sm:$0xff]
    %v558 = vld [vmem:[%s1 + $0x60] sm:$0xff]
    %v559 = vld [vmem:[%s1 + $0x68] sm:$0xff]
    %v560 = vld [vmem:[%s1 + $0x70] sm:$0xff]
    %v561 = vld [vmem:[%s1 + $0x78] sm:$0xff]
    %v562 = vld [vmem:[%s1 + $0x80] sm:$0xff]
    %v563 = vld [vmem:[%s1 + $0x88] sm:$0xff]
    %v564 = vld [vmem:[%s1 + $0x90] sm:$0xff]
    %v565 = vld [vmem:[%s1 + $0x98] sm:$0xff]
    %v566 = vld [vmem:[%s1 + $0xa0] sm:$0xff]
    %v567 = vld [vmem:[%s1 + $0xa8] sm:$0xff]
    %v568 = vld [vmem:[%s1 + $0xb0] sm:$0xff]
    %v569 = vld [vmem:[%s1 + $0xb8] sm:$0xff]
    %v570 = vld [vmem:[%s1 + $0xc0] sm:$0xff]
    %v571 = vld [vmem:[%s1 + $0xc8] sm:$0xff]
    %v572 = vld [vmem:[%s1 + $0xd0] sm:$0xff]
    %v573 = vld [vmem:[%s1 + $0xd8] sm:$0xff]
    %v574 = vld [vmem:[%s1 + $0xe0] sm:$0xff]
    %v575 = vld [vmem:[%s1 + $0xe8] sm:$0xff]
    %v576 = vld [vmem:[%s1 + $0xf0] sm:$0xff]
    %v577 = vld [vmem:[%s1 + $0xf8] sm:$0xff]
    %v578 = vld [vmem:[%s1 + $0x100] sm:$0xff]
    %v579 = vld [vmem:[%s1 + $0x108] sm:$0xff]
    %v580 = vld [vmem:[%s1 + $0x110] sm:$0xff]
    %v581 = vld [vmem:[%s1 + $0x118] sm:$0xff]
    %v582 = vld [vmem:[%s1 + $0x120] sm:$0xff]
    %v583 = vld [vmem:[%s1 + $0x128] sm:$0xff]
    %v584 = vld [vmem:[%s1 + $0x130] sm:$0xff]
    %v585 = vld [vmem:[%s1 + $0x138] sm:$0xff]
    %v586 = vld [vmem:[%s1 + $0x140] sm:$0xff]
    %v587 = vld [vmem:[%s1 + $0x148] sm:$0xff]
    %v588 = vld [vmem:[%s1 + $0x150] sm:$0xff]
    %v589 = vld [vmem:[%s1 + $0x158] sm:$0xff]
    %v590 = vld [vmem:[%s1 + $0x160] sm:$0xff]
    %v591 = vld [vmem:[%s1 + $0x168] sm:$0xff]
    %v592 = vld [vmem:[%s1 + $0x170] sm:$0xff]
    %v593 = vld [vmem:[%s1 + $0x178] sm:$0xff]
    %v595 = vsel %vm96, %v546, 0
    %v598 = vsel %vm96, %v547, 0
    %v601 = vsel %vm96, %v548, 0
    %v604 = vsel %vm96, %v549, 0
    %v607 = vsel %vm96, %v550, 0
    %v610 = vsel %vm96, %v551, 0
    %v613 = vsel %vm96, %v552, 0
    %v616 = vsel %vm96, %v553, 0
    %v619 = vsel %vm96, %v554, 0
    %v622 = vsel %vm96, %v555, 0
    %v625 = vsel %vm96, %v556, 0
    %v628 = vsel %vm96, %v557, 0
    %v631 = vsel %vm96, %v558, 0
    %v634 = vsel %vm96, %v559, 0
    %v637 = vsel %vm96, %v560, 0
    %v640 = vsel %vm96, %v561, 0
    %v643 = vsel %vm96, %v562, 0
    %v646 = vsel %vm96, %v563, 0
    %v649 = vsel %vm96, %v564, 0
    %v652 = vsel %vm96, %v565, 0
    %v655 = vsel %vm96, %v566, 0
    %v658 = vsel %vm96, %v567, 0
    %v661 = vsel %vm96, %v568, 0
    %v664 = vsel %vm96, %v569, 0
    %v667 = vsel %vm96, %v570, 0
    %v670 = vsel %vm96, %v571, 0
    %v673 = vsel %vm96, %v572, 0
    %v676 = vsel %vm96, %v573, 0
    %v679 = vsel %vm96, %v574, 0
    %v682 = vsel %vm96, %v575, 0
    %v685 = vsel %vm96, %v576, 0
    %v688 = vsel %vm96, %v577, 0
    %v691 = vsel %vm96, %v578, 0
    %v694 = vsel %vm96, %v579, 0
    %v697 = vsel %vm96, %v580, 0
    %v700 = vsel %vm96, %v581, 0
    %v703 = vsel %vm96, %v582, 0
    %v706 = vsel %vm96, %v583, 0
    %v709 = vsel %vm96, %v584, 0
    %v712 = vsel %vm96, %v585, 0
    %v715 = vsel %vm96, %v586, 0
    %v718 = vsel %vm96, %v587, 0
    %v721 = vsel %vm96, %v588, 0
    %v724 = vsel %vm96, %v589, 0
    %v727 = vsel %vm96, %v590, 0
    %v730 = vsel %vm96, %v591, 0
    %v733 = vsel %vm96, %v592, 0
    %v736 = vsel %vm96, %v593, 0
    %738 = vmatprep.subr.mxu0 0.0
    %739 = vmatpush1.msra.mxu0 %v83
    %740 = vmatprep.subr.mxu0 0.0
    %741 = vmatpush1.msra.mxu0 %v84
    %742 = vmatprep.subr.mxu0 0.0
    %743 = vmatpush1.msra.mxu0 %v85
    %744 = vmatprep.subr.mxu0 0.0
    %745 = vmatpush1.msra.mxu0 %v86
    %746 = vmatprep.subr.mxu0 0.0
    %747 = vmatpush1.msra.mxu0 %v87
    %748 = vmatprep.subr.mxu0 0.0
    %749 = vmatpush1.msra.mxu0 %v88
    %750 = vmatprep.subr.mxu0 0.0
    %751 = vmatpush1.msra.mxu0 0.0
    %752 = vmatprep.subr.mxu0 0.0
    %753 = vmatpush1.msra.mxu0 0.0
    %754 = vmatprep.subr.mxu0 0.0
    %755 = vmatpush1.msra.mxu0 0.0
    %756 = vmatprep.subr.mxu0 0.0
    %757 = vmatpush1.msra.mxu0 0.0
    %758 = vmatprep.subr.mxu0 0.0
    %759 = vmatpush1.msra.mxu0 0.0
    %760 = vmatprep.subr.mxu0 0.0
    %761 = vmatpush1.msra.mxu0 0.0
    %762 = vmatprep.subr.mxu0 0.0
    %763 = vmatpush1.msra.mxu0 0.0
    %764 = vmatprep.subr.mxu0 0.0
    %765 = vmatpush1.msra.mxu0 0.0
    %766 = vmatprep.subr.mxu0 0.0
    %767 = vmatpush1.msra.mxu0 0.0
    %768 = vmatprep.subr.mxu0 0.0
    %769 = vmatpush1.msra.mxu0 0.0
    %770 = vmatprep.subr.mxu0 0.0
    %771 = vmatpush1.msra.mxu0 0.0
    %772 = vmatprep.subr.mxu0 0.0
    %773 = vmatpush1.msra.mxu0 0.0
    %774 = vmatprep.subr.mxu0 0.0
    %775 = vmatpush1.msra.mxu0 0.0
    %776 = vmatprep.subr.mxu0 0.0
    %777 = vmatpush1.msra.mxu0 0.0
    %778 = vmatprep.subr.mxu0 0.0
    %779 = vmatpush1.msra.mxu0 0.0
    %780 = vmatprep.subr.mxu0 0.0
    %781 = vmatpush1.msra.mxu0 0.0
    %782 = vmatprep.subr.mxu0 0.0
    %783 = vmatpush1.msra.mxu0 0.0
    %784 = vmatprep.subr.mxu0 0.0
    %785 = vmatpush1.msra.mxu0 0.0
    %786 = vmatprep.subr.mxu0 0.0
    %787 = vmatpush1.msra.mxu0 0.0
    %788 = vmatprep.subr.mxu0 0.0
    %789 = vmatpush1.msra.mxu0 0.0
    %790 = vmatprep.subr.mxu0 0.0
    %791 = vmatpush1.msra.mxu0 0.0
    %792 = vmatprep.subr.mxu0 0.0
    %793 = vmatpush1.msra.mxu0 0.0
    %794 = vmatprep.subr.mxu0 0.0
    %795 = vmatpush1.msra.mxu0 0.0
    %796 = vmatprep.subr.mxu0 0.0
    %797 = vmatpush1.msra.mxu0 0.0
    %798 = vmatprep.subr.mxu0 0.0
    %799 = vmatpush1.msra.mxu0 0.0
    %800 = vmatprep.subr.mxu0 0.0
    %801 = vmatpush1.msra.mxu0 0.0
    %802 = vmatprep.mubr.f32.mxu0 0.0
    %803 = vmatmul.mubr.f32.gmra.mrb[0].mxu0 %v595
    %v804 = vpop.f32.mrb[0].mxu0
    %v805 = vadd.f32 %v94, %v804
    %v806 = vpop.f32.mrb[0].mxu0
    %807 = vmatprep.mubr.f32.mxu0 0.0
    %808 = vmatmul.mubr.f32.gmra.mrb[0].mxu0 %v598
    %v809 = vpop.f32.mrb[0].mxu0
    %v810 = vadd.f32 %v94, %v809
    %v811 = vpop.f32.mrb[0].mxu0
    %812 = vmatprep.mubr.f32.mxu0 0.0
    %813 = vmatmul.mubr.f32.gmra.mrb[0].mxu0 %v601
    %v814 = vpop.f32.mrb[0].mxu0
    %v815 = vadd.f32 %v94, %v814
    %v816 = vpop.f32.mrb[0].mxu0
    %817 = vmatprep.mubr.f32.mxu0 0.0
    %818 = vmatmul.mubr.f32.gmra.mrb[0].mxu0 %v604
    %v819 = vpop.f32.mrb[0].mxu0
    %v820 = vadd.f32 %v94, %v819
    %v821 = vpop.f32.mrb[0].mxu0
    %822 = vmatprep.mubr.f32.mxu0 0.0
    %823 = vmatmul.mubr.f32.gmra.mrb[0].mxu0 %v607
    %v824 = vpop.f32.mrb[0].mxu0
    %v825 = vadd.f32 %v94, %v824
    %v826 = vpop.f32.mrb[0].mxu0
    %827 = vmatprep.mubr.f32.mxu0 0.0
    %828 = vmatmul.mubr.f32.gmra.mrb[0].mxu0 %v610
    %v829 = vpop.f32.mrb[0].mxu0
    %v830 = vadd.f32 %v94, %v829
    %v831 = vpop.f32.mrb[0].mxu0
    %832 = vmatprep.mubr.f32.mxu0 0.0
    %833 = vmatmul.mubr.f32.gmra.mrb[0].mxu0 %v613
    %v834 = vpop.f32.mrb[0].mxu0
    %v835 = vadd.f32 %v94, %v834
    %v836 = vpop.f32.mrb[0].mxu0
    %837 = vmatprep.mubr.f32.mxu0 0.0
    %838 = vmatmul.mubr.f32.gmra.mrb[0].mxu0 %v616
    %v839 = vpop.f32.mrb[0].mxu0
    %v840 = vadd.f32 %v94, %v839
    %v841 = vpop.f32.mrb[0].mxu0
    %842 = vmatprep.mubr.f32.mxu0 0.0
    %843 = vmatmul.mubr.f32.gmra.mrb[0].mxu0 %v619
    %v844 = vpop.f32.mrb[0].mxu0
    %v845 = vadd.f32 %v94, %v844
    %v846 = vpop.f32.mrb[0].mxu0
    %847 = vmatprep.mubr.f32.mxu0 0.0
    %848 = vmatmul.mubr.f32.gmra.mrb[0].mxu0 %v622
    %v849 = vpop.f32.mrb[0].mxu0
    %v850 = vadd.f32 %v94, %v849
    %v851 = vpop.f32.mrb[0].mxu0
    %852 = vmatprep.mubr.f32.mxu0 0.0
    %853 = vmatmul.mubr.f32.gmra.mrb[0].mxu0 %v625
    %v854 = vpop.f32.mrb[0].mxu0
    %v855 = vadd.f32 %v94, %v854
    %v856 = vpop.f32.mrb[0].mxu0
    %857 = vmatprep.mubr.f32.mxu0 0.0
    %858 = vmatmul.mubr.f32.gmra.mrb[0].mxu0 %v628
    %v859 = vpop.f32.mrb[0].mxu0
    %v860 = vadd.f32 %v94, %v859
    %v861 = vpop.f32.mrb[0].mxu0
    %862 = vmatprep.mubr.f32.mxu0 0.0
    %863 = vmatmul.mubr.f32.gmra.mrb[0].mxu0 %v631
    %v864 = vpop.f32.mrb[0].mxu0
    %v865 = vadd.f32 %v94, %v864
    %v866 = vpop.f32.mrb[0].mxu0
    %867 = vmatprep.mubr.f32.mxu0 0.0
    %868 = vmatmul.mubr.f32.gmra.mrb[0].mxu0 %v634
    %v869 = vpop.f32.mrb[0].mxu0
    %v870 = vadd.f32 %v94, %v869
    %v871 = vpop.f32.mrb[0].mxu0
    %872 = vmatprep.mubr.f32.mxu0 0.0
    %873 = vmatmul.mubr.f32.gmra.mrb[0].mxu0 %v637
    %v874 = vpop.f32.mrb[0].mxu0
    %v875 = vadd.f32 %v94, %v874
    %v876 = vpop.f32.mrb[0].mxu0
    %877 = vmatprep.mubr.f32.mxu0 0.0
    %878 = vmatmul.mubr.f32.gmra.mrb[0].mxu0 %v640
    %v879 = vpop.f32.mrb[0].mxu0
    %v880 = vadd.f32 %v94, %v879
    %v881 = vpop.f32.mrb[0].mxu0
    %882 = vmatprep.mubr.f32.mxu0 0.0
    %883 = vmatmul.mubr.f32.gmra.mrb[0].mxu0 %v643
    %v884 = vpop.f32.mrb[0].mxu0
    %v885 = vadd.f32 %v94, %v884
    %v886 = vpop.f32.mrb[0].mxu0
    %887 = vmatprep.mubr.f32.mxu0 0.0
    %888 = vmatmul.mubr.f32.gmra.mrb[0].mxu0 %v646
    %v889 = vpop.f32.mrb[0].mxu0
    %v890 = vadd.f32 %v94, %v889
    %v891 = vpop.f32.mrb[0].mxu0
    %892 = vmatprep.mubr.f32.mxu0 0.0
    %893 = vmatmul.mubr.f32.gmra.mrb[0].mxu0 %v649
    %v894 = vpop.f32.mrb[0].mxu0
    %v895 = vadd.f32 %v94, %v894
    %v896 = vpop.f32.mrb[0].mxu0
    %897 = vmatprep.mubr.f32.mxu0 0.0
    %898 = vmatmul.mubr.f32.gmra.mrb[0].mxu0 %v652
    %v899 = vpop.f32.mrb[0].mxu0
    %v900 = vadd.f32 %v94, %v899
    %v901 = vpop.f32.mrb[0].mxu0
    %902 = vmatprep.mubr.f32.mxu0 0.0
    %903 = vmatmul.mubr.f32.gmra.mrb[0].mxu0 %v655
    %v904 = vpop.f32.mrb[0].mxu0
    %v905 = vadd.f32 %v94, %v904
    %v906 = vpop.f32.mrb[0].mxu0
    %907 = vmatprep.mubr.f32.mxu0 0.0
    %908 = vmatmul.mubr.f32.gmra.mrb[0].mxu0 %v658
    %v909 = vpop.f32.mrb[0].mxu0
    %v910 = vadd.f32 %v94, %v909
    %v911 = vpop.f32.mrb[0].mxu0
    %912 = vmatprep.mubr.f32.mxu0 0.0
    %913 = vmatmul.mubr.f32.gmra.mrb[0].mxu0 %v661
    %v914 = vpop.f32.mrb[0].mxu0
    %v915 = vadd.f32 %v94, %v914
    %v916 = vpop.f32.mrb[0].mxu0
    %917 = vmatprep.mubr.f32.mxu0 0.0
    %918 = vmatmul.mubr.f32.gmra.mrb[0].mxu0 %v664
    %v919 = vpop.f32.mrb[0].mxu0
    %v920 = vadd.f32 %v94, %v919
    %v921 = vpop.f32.mrb[0].mxu0
    %922 = vmatprep.mubr.f32.mxu0 0.0
    %923 = vmatmul.mubr.f32.gmra.mrb[0].mxu0 %v667
    %v924 = vpop.f32.mrb[0].mxu0
    %v925 = vadd.f32 %v94, %v924
    %v926 = vpop.f32.mrb[0].mxu0
    %927 = vmatprep.mubr.f32.mxu0 0.0
    %928 = vmatmul.mubr.f32.gmra.mrb[0].mxu0 %v670
    %v929 = vpop.f32.mrb[0].mxu0
    %v930 = vadd.f32 %v94, %v929
    %v931 = vpop.f32.mrb[0].mxu0
    %932 = vmatprep.mubr.f32.mxu0 0.0
    %933 = vmatmul.mubr.f32.gmra.mrb[0].mxu0 %v673
    %v934 = vpop.f32.mrb[0].mxu0
    %v935 = vadd.f32 %v94, %v934
    %v936 = vpop.f32.mrb[0].mxu0
    %937 = vmatprep.mubr.f32.mxu0 0.0
    %938 = vmatmul.mubr.f32.gmra.mrb[0].mxu0 %v676
    %v939 = vpop.f32.mrb[0].mxu0
    %v940 = vadd.f32 %v94, %v939
    %v941 = vpop.f32.mrb[0].mxu0
    %942 = vmatprep.mubr.f32.mxu0 0.0
    %943 = vmatmul.mubr.f32.gmra.mrb[0].mxu0 %v679
    %v944 = vpop.f32.mrb[0].mxu0
    %v945 = vadd.f32 %v94, %v944
    %v946 = vpop.f32.mrb[0].mxu0
    %947 = vmatprep.mubr.f32.mxu0 0.0
    %948 = vmatmul.mubr.f32.gmra.mrb[0].mxu0 %v682
    %v949 = vpop.f32.mrb[0].mxu0
    %v950 = vadd.f32 %v94, %v949
    %v951 = vpop.f32.mrb[0].mxu0
    %952 = vmatprep.mubr.f32.mxu0 0.0
    %953 = vmatmul.mubr.f32.gmra.mrb[0].mxu0 %v685
    %v954 = vpop.f32.mrb[0].mxu0
    %v955 = vadd.f32 %v94, %v954
    %v956 = vpop.f32.mrb[0].mxu0
    %957 = vmatprep.mubr.f32.mxu0 0.0
    %958 = vmatmul.mubr.f32.gmra.mrb[0].mxu0 %v688
    %v959 = vpop.f32.mrb[0].mxu0
    %v960 = vadd.f32 %v94, %v959
    %v961 = vpop.f32.mrb[0].mxu0
    %962 = vmatprep.mubr.f32.mxu0 0.0
    %963 = vmatmul.mubr.f32.gmra.mrb[0].mxu0 %v691
    %v964 = vpop.f32.mrb[0].mxu0
    %v965 = vadd.f32 %v94, %v964
    %v966 = vpop.f32.mrb[0].mxu0
    %967 = vmatprep.mubr.f32.mxu0 0.0
    %968 = vmatmul.mubr.f32.gmra.mrb[0].mxu0 %v694
    %v969 = vpop.f32.mrb[0].mxu0
    %v970 = vadd.f32 %v94, %v969
    %v971 = vpop.f32.mrb[0].mxu0
    %972 = vmatprep.mubr.f32.mxu0 0.0
    %973 = vmatmul.mubr.f32.gmra.mrb[0].mxu0 %v697
    %v974 = vpop.f32.mrb[0].mxu0
    %v975 = vadd.f32 %v94, %v974
    %v976 = vpop.f32.mrb[0].mxu0
    %977 = vmatprep.mubr.f32.mxu0 0.0
    %978 = vmatmul.mubr.f32.gmra.mrb[0].mxu0 %v700
    %v979 = vpop.f32.mrb[0].mxu0
    %v980 = vadd.f32 %v94, %v979
    %v981 = vpop.f32.mrb[0].mxu0
    %982 = vmatprep.mubr.f32.mxu0 0.0
    %983 = vmatmul.mubr.f32.gmra.mrb[0].mxu0 %v703
    %v984 = vpop.f32.mrb[0].mxu0
    %v985 = vadd.f32 %v94, %v984
    %v986 = vpop.f32.mrb[0].mxu0
    %987 = vmatprep.mubr.f32.mxu0 0.0
    %988 = vmatmul.mubr.f32.gmra.mrb[0].mxu0 %v706
    %v989 = vpop.f32.mrb[0].mxu0
    %v990 = vadd.f32 %v94, %v989
    %v991 = vpop.f32.mrb[0].mxu0
    %992 = vmatprep.mubr.f32.mxu0 0.0
    %993 = vmatmul.mubr.f32.gmra.mrb[0].mxu0 %v709
    %v994 = vpop.f32.mrb[0].mxu0
    %v995 = vadd.f32 %v94, %v994
    %v996 = vpop.f32.mrb[0].mxu0
    %997 = vmatprep.mubr.f32.mxu0 0.0
    %998 = vmatmul.mubr.f32.gmra.mrb[0].mxu0 %v712
    %v999 = vpop.f32.mrb[0].mxu0
    %v1000 = vadd.f32 %v94, %v999
    %v1001 = vpop.f32.mrb[0].mxu0
    %1002 = vmatprep.mubr.f32.mxu0 0.0
    %1003 = vmatmul.mubr.f32.gmra.mrb[0].mxu0 %v715
    %v1004 = vpop.f32.mrb[0].mxu0
    %v1005 = vadd.f32 %v94, %v1004
    %v1006 = vpop.f32.mrb[0].mxu0
    %1007 = vmatprep.mubr.f32.mxu0 0.0
    %1008 = vmatmul.mubr.f32.gmra.mrb[0].mxu0 %v718
    %v1009 = vpop.f32.mrb[0].mxu0
    %v1010 = vadd.f32 %v94, %v1009
    %v1011 = vpop.f32.mrb[0].mxu0
    %1012 = vmatprep.mubr.f32.mxu0 0.0
    %1013 = vmatmul.mubr.f32.gmra.mrb[0].mxu0 %v721
    %v1014 = vpop.f32.mrb[0].mxu0
    %v1015 = vadd.f32 %v94, %v1014
    %v1016 = vpop.f32.mrb[0].mxu0
    %1017 = vmatprep.mubr.f32.mxu0 0.0
    %1018 = vmatmul.mubr.f32.gmra.mrb[0].mxu0 %v724
    %v1019 = vpop.f32.mrb[0].mxu0
    %v1020 = vadd.f32 %v94, %v1019
    %v1021 = vpop.f32.mrb[0].mxu0
    %1022 = vmatprep.mubr.f32.mxu0 0.0
    %1023 = vmatmul.mubr.f32.gmra.mrb[0].mxu0 %v727
    %v1024 = vpop.f32.mrb[0].mxu0
    %v1025 = vadd.f32 %v94, %v1024
    %v1026 = vpop.f32.mrb[0].mxu0
    %1027 = vmatprep.mubr.f32.mxu0 0.0
    %1028 = vmatmul.mubr.f32.gmra.mrb[0].mxu0 %v730
    %v1029 = vpop.f32.mrb[0].mxu0
    %v1030 = vadd.f32 %v94, %v1029
    %v1031 = vpop.f32.mrb[0].mxu0
    %1032 = vmatprep.mubr.f32.mxu0 0.0
    %1033 = vmatmul.mubr.f32.gmra.mrb[0].mxu0 %v733
    %v1034 = vpop.f32.mrb[0].mxu0
    %v1035 = vadd.f32 %v94, %v1034
    %v1036 = vpop.f32.mrb[0].mxu0
    %1037 = vmatprep.mubr.f32.mxu0 0.0
    %1038 = vmatmul.mubr.f32.gmra.mrb[0].mxu0 %v736
    %v1039 = vpop.f32.mrb[0].mxu0
    %v1040 = vadd.f32 %v94, %v1039
    %v1041 = vpop.f32.mrb[0].mxu0
    %1042 = vdwg.mxu0
    %v1043 = vmax.f32 %v308, 0.0
    %v1044 = vmax.f32 %v313, 0.0
    %v1045 = vmax.f32 %v318, 0.0
    %v1046 = vmax.f32 %v323, 0.0
    %v1047 = vmax.f32 %v328, 0.0
    %v1048 = vmax.f32 %v333, 0.0
    %v1049 = vmax.f32 %v338, 0.0
    %v1050 = vmax.f32 %v343, 0.0
    %v1051 = vmax.f32 %v348, 0.0
    %v1052 = vmax.f32 %v353, 0.0
    %v1053 = vmax.f32 %v358, 0.0
    %v1054 = vmax.f32 %v363, 0.0
    %v1055 = vmax.f32 %v368, 0.0
    %v1056 = vmax.f32 %v373, 0.0
    %v1057 = vmax.f32 %v378, 0.0
    %v1058 = vmax.f32 %v383, 0.0
    %v1059 = vmax.f32 %v388, 0.0
    %v1060 = vmax.f32 %v393, 0.0
    %v1061 = vmax.f32 %v398, 0.0
    %v1062 = vmax.f32 %v403, 0.0
    %v1063 = vmax.f32 %v408, 0.0
    %v1064 = vmax.f32 %v413, 0.0
    %v1065 = vmax.f32 %v418, 0.0
    %v1066 = vmax.f32 %v423, 0.0
    %v1067 = vmax.f32 %v428, 0.0
    %v1068 = vmax.f32 %v433, 0.0
    %v1069 = vmax.f32 %v438, 0.0
    %v1070 = vmax.f32 %v443, 0.0
    %v1071 = vmax.f32 %v448, 0.0
    %v1072 = vmax.f32 %v453, 0.0
    %v1073 = vmax.f32 %v458, 0.0
    %v1074 = vmax.f32 %v463, 0.0
    %v1075 = vmax.f32 %v468, 0.0
    %v1076 = vmax.f32 %v473, 0.0
    %v1077 = vmax.f32 %v478, 0.0
    %v1078 = vmax.f32 %v483, 0.0
    %v1079 = vmax.f32 %v488, 0.0
    %v1080 = vmax.f32 %v493, 0.0
    %v1081 = vmax.f32 %v498, 0.0
    %v1082 = vmax.f32 %v503, 0.0
    %v1083 = vmax.f32 %v508, 0.0
    %v1084 = vmax.f32 %v513, 0.0
    %v1085 = vmax.f32 %v518, 0.0
    %v1086 = vmax.f32 %v523, 0.0
    %v1087 = vmax.f32 %v528, 0.0
    %v1088 = vmax.f32 %v533, 0.0
    %v1089 = vmax.f32 %v538, 0.0
    %v1090 = vmax.f32 %v543, 0.0
    %v1091 = vmax.f32 %v805, 0.0
    %v1092 = vmax.f32 %v810, 0.0
    %v1093 = vmax.f32 %v815, 0.0
    %v1094 = vmax.f32 %v820, 0.0
    %v1095 = vmax.f32 %v825, 0.0
    %v1096 = vmax.f32 %v830, 0.0
    %v1097 = vmax.f32 %v835, 0.0
    %v1098 = vmax.f32 %v840, 0.0
    %v1099 = vmax.f32 %v845, 0.0
    %v1100 = vmax.f32 %v850, 0.0
    %v1101 = vmax.f32 %v855, 0.0
    %v1102 = vmax.f32 %v860, 0.0
    %v1103 = vmax.f32 %v865, 0.0
    %v1104 = vmax.f32 %v870, 0.0
    %v1105 = vmax.f32 %v875, 0.0
    %v1106 = vmax.f32 %v880, 0.0
    %v1107 = vmax.f32 %v885, 0.0
    %v1108 = vmax.f32 %v890, 0.0
    %v1109 = vmax.f32 %v895, 0.0
    %v1110 = vmax.f32 %v900, 0.0
    %v1111 = vmax.f32 %v905, 0.0
    %v1112 = vmax.f32 %v910, 0.0
    %v1113 = vmax.f32 %v915, 0.0
    %v1114 = vmax.f32 %v920, 0.0
    %v1115 = vmax.f32 %v925, 0.0
    %v1116 = vmax.f32 %v930, 0.0
    %v1117 = vmax.f32 %v935, 0.0
    %v1118 = vmax.f32 %v940, 0.0
    %v1119 = vmax.f32 %v945, 0.0
    %v1120 = vmax.f32 %v950, 0.0
    %v1121 = vmax.f32 %v955, 0.0
    %v1122 = vmax.f32 %v960, 0.0
    %v1123 = vmax.f32 %v965, 0.0
    %v1124 = vmax.f32 %v970, 0.0
    %v1125 = vmax.f32 %v975, 0.0
    %v1126 = vmax.f32 %v980, 0.0
    %v1127 = vmax.f32 %v985, 0.0
    %v1128 = vmax.f32 %v990, 0.0
    %v1129 = vmax.f32 %v995, 0.0
    %v1130 = vmax.f32 %v1000, 0.0
    %v1131 = vmax.f32 %v1005, 0.0
    %v1132 = vmax.f32 %v1010, 0.0
    %v1133 = vmax.f32 %v1015, 0.0
    %v1134 = vmax.f32 %v1020, 0.0
    %v1135 = vmax.f32 %v1025, 0.0
    %v1136 = vmax.f32 %v1030, 0.0
    %v1137 = vmax.f32 %v1035, 0.0
    %v1138 = vmax.f32 %v1040, 0.0
    %v1139 = vld [vmem:[%s4] sm:$0xff]
    %v1140 = vld [vmem:[%s4 + $0x8] sm:$0xff]
    %v1141 = vld [vmem:[%s4 + $0x10] sm:$0xff]
    %v1142 = vld [vmem:[%s4 + $0x18] sm:$0xff]
    %v1143 = vld [vmem:[%s4 + $0x20] sm:$0xff]
    %v1144 = vld [vmem:[%s4 + $0x28] sm:$0xff]
    %v1145 = vld [vmem:[%s4 + $0x30] sm:$0xff]
    %v1146 = vld [vmem:[%s4 + $0x38] sm:$0xff]
    %v1147 = vld [vmem:[%s4 + $0x40] sm:$0xff]
    %v1148 = vld [vmem:[%s4 + $0x48] sm:$0xff]
    %v1149 = vld [vmem:[%s4 + $0x50] sm:$0xff]
    %v1150 = vld [vmem:[%s4 + $0x58] sm:$0xff]
    %v1151 = vld [vmem:[%s4 + $0x60] sm:$0xff]
    %v1152 = vld [vmem:[%s4 + $0x68] sm:$0xff]
    %v1153 = vld [vmem:[%s4 + $0x70] sm:$0xff]
    %v1154 = vld [vmem:[%s4 + $0x78] sm:$0xff]
    %v1155 = vld [vmem:[%s5] sm:$0xff]
    %v1156 = vld [vmem:[%s5 + $0x8] sm:$0xff]
    %v1157 = vld [vmem:[%s5 + $0x10] sm:$0xff]
    %v1158 = vld [vmem:[%s5 + $0x18] sm:$0xff]
    %v1159 = vld [vmem:[%s5 + $0x20] sm:$0xff]
    %v1160 = vld [vmem:[%s5 + $0x28] sm:$0xff]
    %v1161 = vld [vmem:[%s5 + $0x30] sm:$0xff]
    %v1162 = vld [vmem:[%s5 + $0x38] sm:$0xff]
    %v1163 = vld [vmem:[%s5 + $0x40] sm:$0xff]
    %v1164 = vld [vmem:[%s5 + $0x48] sm:$0xff]
    %v1165 = vld [vmem:[%s5 + $0x50] sm:$0xff]
    %v1166 = vld [vmem:[%s5 + $0x58] sm:$0xff]
    %v1167 = vld [vmem:[%s5 + $0x60] sm:$0xff]
    %v1168 = vld [vmem:[%s5 + $0x68] sm:$0xff]
    %v1169 = vld [vmem:[%s5 + $0x70] sm:$0xff]
    %v1170 = vld [vmem:[%s5 + $0x78] sm:$0xff]
    %1171 = vmatprep.subr.mxu0 0.0
    %1172 = vmatpush1.msra.mxu0 %v1155
    %1173 = vmatprep.subr.mxu0 0.0
    %1174 = vmatpush1.msra.mxu0 %v1156
    %1175 = vmatprep.subr.mxu0 0.0
    %1176 = vmatpush1.msra.mxu0 %v1157
    %1177 = vmatprep.subr.mxu0 0.0
    %1178 = vmatpush1.msra.mxu0 %v1158
    %1179 = vmatprep.subr.mxu0 0.0
    %1180 = vmatpush1.msra.mxu0 %v1159
    %1181 = vmatprep.subr.mxu0 0.0
    %1182 = vmatpush1.msra.mxu0 %v1160
    %1183 = vmatprep.subr.mxu0 0.0
    %1184 = vmatpush1.msra.mxu0 %v1161
    %1185 = vmatprep.subr.mxu0 0.0
    %1186 = vmatpush1.msra.mxu0 %v1162
    %1187 = vmatprep.subr.mxu0 0.0
    %1188 = vmatpush1.msra.mxu0 %v1163
    %1189 = vmatprep.subr.mxu0 0.0
    %1190 = vmatpush1.msra.mxu0 %v1164
    %1191 = vmatprep.subr.mxu0 0.0
    %1192 = vmatpush1.msra.mxu0 %v1165
    %1193 = vmatprep.subr.mxu0 0.0
    %1194 = vmatpush1.msra.mxu0 %v1166
    %1195 = vmatprep.subr.mxu0 0.0
    %1196 = vmatpush1.msra.mxu0 %v1167
    %1197 = vmatprep.subr.mxu0 0.0
    %1198 = vmatpush1.msra.mxu0 %v1168
    %1199 = vmatprep.subr.mxu0 0.0
    %1200 = vmatpush1.msra.mxu0 %v1169
    %1201 = vmatprep.subr.mxu0 0.0
    %1202 = vmatpush1.msra.mxu0 %v1170
    %1203 = vmatprep.subr.mxu0 0.0
    %1204 = vmatpush1.msra.mxu0 0.0
    %1205 = vmatprep.subr.mxu0 0.0
    %1206 = vmatpush1.msra.mxu0 0.0
    %1207 = vmatprep.subr.mxu0 0.0
    %1208 = vmatpush1.msra.mxu0 0.0
    %1209 = vmatprep.subr.mxu0 0.0
    %1210 = vmatpush1.msra.mxu0 0.0
    %1211 = vmatprep.subr.mxu0 0.0
    %1212 = vmatpush1.msra.mxu0 0.0
    %1213 = vmatprep.subr.mxu0 0.0
    %1214 = vmatpush1.msra.mxu0 0.0
    %1215 = vmatprep.subr.mxu0 0.0
    %1216 = vmatpush1.msra.mxu0 0.0
    %1217 = vmatprep.subr.mxu0 0.0
    %1218 = vmatpush1.msra.mxu0 0.0
    %1219 = vmatprep.subr.mxu0 0.0
    %1220 = vmatpush1.msra.mxu0 0.0
    %1221 = vmatprep.subr.mxu0 0.0
    %1222 = vmatpush1.msra.mxu0 0.0
    %1223 = vmatprep.subr.mxu0 0.0
    %1224 = vmatpush1.msra.mxu0 0.0
    %1225 = vmatprep.subr.mxu0 0.0
    %1226 = vmatpush1.msra.mxu0 0.0
    %1227 = vmatprep.subr.mxu0 0.0
    %1228 = vmatpush1.msra.mxu0 0.0
    %1229 = vmatprep.subr.mxu0 0.0
    %1230 = vmatpush1.msra.mxu0 0.0
    %1231 = vmatprep.subr.mxu0 0.0
    %1232 = vmatpush1.msra.mxu0 0.0
    %1233 = vmatprep.subr.mxu0 0.0
    %1234 = vmatpush1.msra.mxu0 0.0
    %1235 = vmatprep.mubr.f32.mxu0 0.0
    %1236 = vmatmul.mubr.f32.gmra.mrb[0].mxu0 %v1091
    %v1237 = vpop.f32.mrb[0].mxu0
    %v1238 = vadd.f32 0.0, %v1237
    %v1239 = vpop.f32.mrb[0].mxu0
    %1240 = vmatprep.mubr.f32.mxu0 0.0
    %1241 = vmatmul.mubr.f32.gmra.mrb[0].mxu0 %v1092
    %v1242 = vpop.f32.mrb[0].mxu0
    %v1243 = vadd.f32 0.0, %v1242
    %v1244 = vpop.f32.mrb[0].mxu0
    %1245 = vmatprep.mubr.f32.mxu0 0.0
    %1246 = vmatmul.mubr.f32.gmra.mrb[0].mxu0 %v1093
    %v1247 = vpop.f32.mrb[0].mxu0
    %v1248 = vadd.f32 0.0, %v1247
    %v1249 = vpop.f32.mrb[0].mxu0
    %1250 = vmatprep.mubr.f32.mxu0 0.0
    %1251 = vmatmul.mubr.f32.gmra.mrb[0].mxu0 %v1094
    %v1252 = vpop.f32.mrb[0].mxu0
    %v1253 = vadd.f32 0.0, %v1252
    %v1254 = vpop.f32.mrb[0].mxu0
    %1255 = vmatprep.mubr.f32.mxu0 0.0
    %1256 = vmatmul.mubr.f32.gmra.mrb[0].mxu0 %v1095
    %v1257 = vpop.f32.mrb[0].mxu0
    %v1258 = vadd.f32 0.0, %v1257
    %v1259 = vpop.f32.mrb[0].mxu0
    %1260 = vmatprep.mubr.f32.mxu0 0.0
    %1261 = vmatmul.mubr.f32.gmra.mrb[0].mxu0 %v1096
    %v1262 = vpop.f32.mrb[0].mxu0
    %v1263 = vadd.f32 0.0, %v1262
    %v1264 = vpop.f32.mrb[0].mxu0
    %1265 = vmatprep.mubr.f32.mxu0 0.0
    %1266 = vmatmul.mubr.f32.gmra.mrb[0].mxu0 %v1097
    %v1267 = vpop.f32.mrb[0].mxu0
    %v1268 = vadd.f32 0.0, %v1267
    %v1269 = vpop.f32.mrb[0].mxu0
    %1270 = vmatprep.mubr.f32.mxu0 0.0
    %1271 = vmatmul.mubr.f32.gmra.mrb[0].mxu0 %v1098
    %v1272 = vpop.f32.mrb[0].mxu0
    %v1273 = vadd.f32 0.0, %v1272
    %v1274 = vpop.f32.mrb[0].mxu0
    %1275 = vmatprep.mubr.f32.mxu0 0.0
    %1276 = vmatmul.mubr.f32.gmra.mrb[0].mxu0 %v1099
    %v1277 = vpop.f32.mrb[0].mxu0
    %v1278 = vadd.f32 0.0, %v1277
    %v1279 = vpop.f32.mrb[0].mxu0
    %1280 = vmatprep.mubr.f32.mxu0 0.0
    %1281 = vmatmul.mubr.f32.gmra.mrb[0].mxu0 %v1100
    %v1282 = vpop.f32.mrb[0].mxu0
    %v1283 = vadd.f32 0.0, %v1282
    %v1284 = vpop.f32.mrb[0].mxu0
    %1285 = vmatprep.mubr.f32.mxu0 0.0
    %1286 = vmatmul.mubr.f32.gmra.mrb[0].mxu0 %v1101
    %v1287 = vpop.f32.mrb[0].mxu0
    %v1288 = vadd.f32 0.0, %v1287
    %v1289 = vpop.f32.mrb[0].mxu0
    %1290 = vmatprep.mubr.f32.mxu0 0.0
    %1291 = vmatmul.mubr.f32.gmra.mrb[0].mxu0 %v1102
    %v1292 = vpop.f32.mrb[0].mxu0
    %v1293 = vadd.f32 0.0, %v1292
    %v1294 = vpop.f32.mrb[0].mxu0
    %1295 = vmatprep.mubr.f32.mxu0 0.0
    %1296 = vmatmul.mubr.f32.gmra.mrb[0].mxu0 %v1103
    %v1297 = vpop.f32.mrb[0].mxu0
    %v1298 = vadd.f32 0.0, %v1297
    %v1299 = vpop.f32.mrb[0].mxu0
    %1300 = vmatprep.mubr.f32.mxu0 0.0
    %1301 = vmatmul.mubr.f32.gmra.mrb[0].mxu0 %v1104
    %v1302 = vpop.f32.mrb[0].mxu0
    %v1303 = vadd.f32 0.0, %v1302
    %v1304 = vpop.f32.mrb[0].mxu0
    %1305 = vmatprep.mubr.f32.mxu0 0.0
    %1306 = vmatmul.mubr.f32.gmra.mrb[0].mxu0 %v1105
    %v1307 = vpop.f32.mrb[0].mxu0
    %v1308 = vadd.f32 0.0, %v1307
    %v1309 = vpop.f32.mrb[0].mxu0
    %1310 = vmatprep.mubr.f32.mxu0 0.0
    %1311 = vmatmul.mubr.f32.gmra.mrb[0].mxu0 %v1106
    %v1312 = vpop.f32.mrb[0].mxu0
    %v1313 = vadd.f32 0.0, %v1312
    %v1314 = vpop.f32.mrb[0].mxu0
    %1315 = vmatprep.mubr.f32.mxu0 0.0
    %1316 = vmatmul.mubr.f32.gmra.mrb[0].mxu0 %v1107
    %v1317 = vpop.f32.mrb[0].mxu0
    %v1318 = vadd.f32 0.0, %v1317
    %v1319 = vpop.f32.mrb[0].mxu0
    %1320 = vmatprep.mubr.f32.mxu0 0.0
    %1321 = vmatmul.mubr.f32.gmra.mrb[0].mxu0 %v1108
    %v1322 = vpop.f32.mrb[0].mxu0
    %v1323 = vadd.f32 0.0, %v1322
    %v1324 = vpop.f32.mrb[0].mxu0
    %1325 = vmatprep.mubr.f32.mxu0 0.0
    %1326 = vmatmul.mubr.f32.gmra.mrb[0].mxu0 %v1109
    %v1327 = vpop.f32.mrb[0].mxu0
    %v1328 = vadd.f32 0.0, %v1327
    %v1329 = vpop.f32.mrb[0].mxu0
    %1330 = vmatprep.mubr.f32.mxu0 0.0
    %1331 = vmatmul.mubr.f32.gmra.mrb[0].mxu0 %v1110
    %v1332 = vpop.f32.mrb[0].mxu0
    %v1333 = vadd.f32 0.0, %v1332
    %v1334 = vpop.f32.mrb[0].mxu0
    %1335 = vmatprep.mubr.f32.mxu0 0.0
    %1336 = vmatmul.mubr.f32.gmra.mrb[0].mxu0 %v1111
    %v1337 = vpop.f32.mrb[0].mxu0
    %v1338 = vadd.f32 0.0, %v1337
    %v1339 = vpop.f32.mrb[0].mxu0
    %1340 = vmatprep.mubr.f32.mxu0 0.0
    %1341 = vmatmul.mubr.f32.gmra.mrb[0].mxu0 %v1112
    %v1342 = vpop.f32.mrb[0].mxu0
    %v1343 = vadd.f32 0.0, %v1342
    %v1344 = vpop.f32.mrb[0].mxu0
    %1345 = vmatprep.mubr.f32.mxu0 0.0
    %1346 = vmatmul.mubr.f32.gmra.mrb[0].mxu0 %v1113
    %v1347 = vpop.f32.mrb[0].mxu0
    %v1348 = vadd.f32 0.0, %v1347
    %v1349 = vpop.f32.mrb[0].mxu0
    %1350 = vmatprep.mubr.f32.mxu0 0.0
    %1351 = vmatmul.mubr.f32.gmra.mrb[0].mxu0 %v1114
    %v1352 = vpop.f32.mrb[0].mxu0
    %v1353 = vadd.f32 0.0, %v1352
    %v1354 = vpop.f32.mrb[0].mxu0
    %1355 = vmatprep.mubr.f32.mxu0 0.0
    %1356 = vmatmul.mubr.f32.gmra.mrb[0].mxu0 %v1115
    %v1357 = vpop.f32.mrb[0].mxu0
    %v1358 = vadd.f32 0.0, %v1357
    %v1359 = vpop.f32.mrb[0].mxu0
    %1360 = vmatprep.mubr.f32.mxu0 0.0
    %1361 = vmatmul.mubr.f32.gmra.mrb[0].mxu0 %v1116
    %v1362 = vpop.f32.mrb[0].mxu0
    %v1363 = vadd.f32 0.0, %v1362
    %v1364 = vpop.f32.mrb[0].mxu0
    %1365 = vmatprep.mubr.f32.mxu0 0.0
    %1366 = vmatmul.mubr.f32.gmra.mrb[0].mxu0 %v1117
    %v1367 = vpop.f32.mrb[0].mxu0
    %v1368 = vadd.f32 0.0, %v1367
    %v1369 = vpop.f32.mrb[0].mxu0
    %1370 = vmatprep.mubr.f32.mxu0 0.0
    %1371 = vmatmul.mubr.f32.gmra.mrb[0].mxu0 %v1118
    %v1372 = vpop.f32.mrb[0].mxu0
    %v1373 = vadd.f32 0.0, %v1372
    %v1374 = vpop.f32.mrb[0].mxu0
    %1375 = vmatprep.mubr.f32.mxu0 0.0
    %1376 = vmatmul.mubr.f32.gmra.mrb[0].mxu0 %v1119
    %v1377 = vpop.f32.mrb[0].mxu0
    %v1378 = vadd.f32 0.0, %v1377
    %v1379 = vpop.f32.mrb[0].mxu0
    %1380 = vmatprep.mubr.f32.mxu0 0.0
    %1381 = vmatmul.mubr.f32.gmra.mrb[0].mxu0 %v1120
    %v1382 = vpop.f32.mrb[0].mxu0
    %v1383 = vadd.f32 0.0, %v1382
    %v1384 = vpop.f32.mrb[0].mxu0
    %1385 = vmatprep.mubr.f32.mxu0 0.0
    %1386 = vmatmul.mubr.f32.gmra.mrb[0].mxu0 %v1121
    %v1387 = vpop.f32.mrb[0].mxu0
    %v1388 = vadd.f32 0.0, %v1387
    %v1389 = vpop.f32.mrb[0].mxu0
    %1390 = vmatprep.mubr.f32.mxu0 0.0
    %1391 = vmatmul.mubr.f32.gmra.mrb[0].mxu0 %v1122
    %v1392 = vpop.f32.mrb[0].mxu0
    %v1393 = vadd.f32 0.0, %v1392
    %v1394 = vpop.f32.mrb[0].mxu0
    %1395 = vmatprep.mubr.f32.mxu0 0.0
    %1396 = vmatmul.mubr.f32.gmra.mrb[0].mxu0 %v1123
    %v1397 = vpop.f32.mrb[0].mxu0
    %v1398 = vadd.f32 0.0, %v1397
    %v1399 = vpop.f32.mrb[0].mxu0
    %1400 = vmatprep.mubr.f32.mxu0 0.0
    %1401 = vmatmul.mubr.f32.gmra.mrb[0].mxu0 %v1124
    %v1402 = vpop.f32.mrb[0].mxu0
    %v1403 = vadd.f32 0.0, %v1402
    %v1404 = vpop.f32.mrb[0].mxu0
    %1405 = vmatprep.mubr.f32.mxu0 0.0
    %1406 = vmatmul.mubr.f32.gmra.mrb[0].mxu0 %v1125
    %v1407 = vpop.f32.mrb[0].mxu0
    %v1408 = vadd.f32 0.0, %v1407
    %v1409 = vpop.f32.mrb[0].mxu0
    %1410 = vmatprep.mubr.f32.mxu0 0.0
    %1411 = vmatmul.mubr.f32.gmra.mrb[0].mxu0 %v1126
    %v1412 = vpop.f32.mrb[0].mxu0
    %v1413 = vadd.f32 0.0, %v1412
    %v1414 = vpop.f32.mrb[0].mxu0
    %1415 = vmatprep.mubr.f32.mxu0 0.0
    %1416 = vmatmul.mubr.f32.gmra.mrb[0].mxu0 %v1127
    %v1417 = vpop.f32.mrb[0].mxu0
    %v1418 = vadd.f32 0.0, %v1417
    %v1419 = vpop.f32.mrb[0].mxu0
    %1420 = vmatprep.mubr.f32.mxu0 0.0
    %1421 = vmatmul.mubr.f32.gmra.mrb[0].mxu0 %v1128
    %v1422 = vpop.f32.mrb[0].mxu0
    %v1423 = vadd.f32 0.0, %v1422
    %v1424 = vpop.f32.mrb[0].mxu0
    %1425 = vmatprep.mubr.f32.mxu0 0.0
    %1426 = vmatmul.mubr.f32.gmra.mrb[0].mxu0 %v1129
    %v1427 = vpop.f32.mrb[0].mxu0
    %v1428 = vadd.f32 0.0, %v1427
    %v1429 = vpop.f32.mrb[0].mxu0
    %1430 = vmatprep.mubr.f32.mxu0 0.0
    %1431 = vmatmul.mubr.f32.gmra.mrb[0].mxu0 %v1130
    %v1432 = vpop.f32.mrb[0].mxu0
    %v1433 = vadd.f32 0.0, %v1432
    %v1434 = vpop.f32.mrb[0].mxu0
    %1435 = vmatprep.mubr.f32.mxu0 0.0
    %1436 = vmatmul.mubr.f32.gmra.mrb[0].mxu0 %v1131
    %v1437 = vpop.f32.mrb[0].mxu0
    %v1438 = vadd.f32 0.0, %v1437
    %v1439 = vpop.f32.mrb[0].mxu0
    %1440 = vmatprep.mubr.f32.mxu0 0.0
    %1441 = vmatmul.mubr.f32.gmra.mrb[0].mxu0 %v1132
    %v1442 = vpop.f32.mrb[0].mxu0
    %v1443 = vadd.f32 0.0, %v1442
    %v1444 = vpop.f32.mrb[0].mxu0
    %1445 = vmatprep.mubr.f32.mxu0 0.0
    %1446 = vmatmul.mubr.f32.gmra.mrb[0].mxu0 %v1133
    %v1447 = vpop.f32.mrb[0].mxu0
    %v1448 = vadd.f32 0.0, %v1447
    %v1449 = vpop.f32.mrb[0].mxu0
    %1450 = vmatprep.mubr.f32.mxu0 0.0
    %1451 = vmatmul.mubr.f32.gmra.mrb[0].mxu0 %v1134
    %v1452 = vpop.f32.mrb[0].mxu0
    %v1453 = vadd.f32 0.0, %v1452
    %v1454 = vpop.f32.mrb[0].mxu0
    %1455 = vmatprep.mubr.f32.mxu0 0.0
    %1456 = vmatmul.mubr.f32.gmra.mrb[0].mxu0 %v1135
    %v1457 = vpop.f32.mrb[0].mxu0
    %v1458 = vadd.f32 0.0, %v1457
    %v1459 = vpop.f32.mrb[0].mxu0
    %1460 = vmatprep.mubr.f32.mxu0 0.0
    %1461 = vmatmul.mubr.f32.gmra.mrb[0].mxu0 %v1136
    %v1462 = vpop.f32.mrb[0].mxu0
    %v1463 = vadd.f32 0.0, %v1462
    %v1464 = vpop.f32.mrb[0].mxu0
    %1465 = vmatprep.mubr.f32.mxu0 0.0
    %1466 = vmatmul.mubr.f32.gmra.mrb[0].mxu0 %v1137
    %v1467 = vpop.f32.mrb[0].mxu0
    %v1468 = vadd.f32 0.0, %v1467
    %v1469 = vpop.f32.mrb[0].mxu0
    %1470 = vmatprep.mubr.f32.mxu0 0.0
    %1471 = vmatmul.mubr.f32.gmra.mrb[0].mxu0 %v1138
    %v1472 = vpop.f32.mrb[0].mxu0
    %v1473 = vadd.f32 0.0, %v1472
    %v1474 = vpop.f32.mrb[0].mxu0
    %1475 = vdwg.mxu0
    %1476 = vmatprep.subr.mxu0 0.0
    %1477 = vmatpush1.msra.mxu0 %v1139
    %1478 = vmatprep.subr.mxu0 0.0
    %1479 = vmatpush1.msra.mxu0 %v1140
    %1480 = vmatprep.subr.mxu0 0.0
    %1481 = vmatpush1.msra.mxu0 %v1141
    %1482 = vmatprep.subr.mxu0 0.0
    %1483 = vmatpush1.msra.mxu0 %v1142
    %1484 = vmatprep.subr.mxu0 0.0
    %1485 = vmatpush1.msra.mxu0 %v1143
    %1486 = vmatprep.subr.mxu0 0.0
    %1487 = vmatpush1.msra.mxu0 %v1144
    %1488 = vmatprep.subr.mxu0 0.0
    %1489 = vmatpush1.msra.mxu0 %v1145
    %1490 = vmatprep.subr.mxu0 0.0
    %1491 = vmatpush1.msra.mxu0 %v1146
    %1492 = vmatprep.subr.mxu0 0.0
    %1493 = vmatpush1.msra.mxu0 %v1147
    %1494 = vmatprep.subr.mxu0 0.0
    %1495 = vmatpush1.msra.mxu0 %v1148
    %1496 = vmatprep.subr.mxu0 0.0
    %1497 = vmatpush1.msra.mxu0 %v1149
    %1498 = vmatprep.subr.mxu0 0.0
    %1499 = vmatpush1.msra.mxu0 %v1150
    %1500 = vmatprep.subr.mxu0 0.0
    %1501 = vmatpush1.msra.mxu0 %v1151
    %1502 = vmatprep.subr.mxu0 0.0
    %1503 = vmatpush1.msra.mxu0 %v1152
    %1504 = vmatprep.subr.mxu0 0.0
    %1505 = vmatpush1.msra.mxu0 %v1153
    %1506 = vmatprep.subr.mxu0 0.0
    %1507 = vmatpush1.msra.mxu0 %v1154
    %1508 = vmatprep.subr.mxu0 0.0
    %1509 = vmatpush1.msra.mxu0 0.0
    %1510 = vmatprep.subr.mxu0 0.0
    %1511 = vmatpush1.msra.mxu0 0.0
    %1512 = vmatprep.subr.mxu0 0.0
    %1513 = vmatpush1.msra.mxu0 0.0
    %1514 = vmatprep.subr.mxu0 0.0
    %1515 = vmatpush1.msra.mxu0 0.0
    %1516 = vmatprep.subr.mxu0 0.0
    %1517 = vmatpush1.msra.mxu0 0.0
    %1518 = vmatprep.subr.mxu0 0.0
    %1519 = vmatpush1.msra.mxu0 0.0
    %1520 = vmatprep.subr.mxu0 0.0
    %1521 = vmatpush1.msra.mxu0 0.0
    %1522 = vmatprep.subr.mxu0 0.0
    %1523 = vmatpush1.msra.mxu0 0.0
    %1524 = vmatprep.subr.mxu0 0.0
    %1525 = vmatpush1.msra.mxu0 0.0
    %1526 = vmatprep.subr.mxu0 0.0
    %1527 = vmatpush1.msra.mxu0 0.0
    %1528 = vmatprep.subr.mxu0 0.0
    %1529 = vmatpush1.msra.mxu0 0.0
    %1530 = vmatprep.subr.mxu0 0.0
    %1531 = vmatpush1.msra.mxu0 0.0
    %1532 = vmatprep.subr.mxu0 0.0
    %1533 = vmatpush1.msra.mxu0 0.0
    %1534 = vmatprep.subr.mxu0 0.0
    %1535 = vmatpush1.msra.mxu0 0.0
    %1536 = vmatprep.subr.mxu0 0.0
    %1537 = vmatpush1.msra.mxu0 0.0
    %1538 = vmatprep.subr.mxu0 0.0
    %1539 = vmatpush1.msra.mxu0 0.0
    %1540 = vmatprep.mubr.f32.mxu0 0.0
    %1541 = vmatmul.mubr.f32.gmra.mrb[0].mxu0 %v1043
    %v1542 = vpop.f32.mrb[0].mxu0
    %v1543 = vadd.f32 %v1238, %v1542
    %v1544 = vpop.f32.mrb[0].mxu0
    %1545 = vmatprep.mubr.f32.mxu0 0.0
    %1546 = vmatmul.mubr.f32.gmra.mrb[0].mxu0 %v1044
    %v1547 = vpop.f32.mrb[0].mxu0
    %v1548 = vadd.f32 %v1243, %v1547
    %v1549 = vpop.f32.mrb[0].mxu0
    %1550 = vmatprep.mubr.f32.mxu0 0.0
    %1551 = vmatmul.mubr.f32.gmra.mrb[0].mxu0 %v1045
    %v1552 = vpop.f32.mrb[0].mxu0
    %v1553 = vadd.f32 %v1248, %v1552
    %v1554 = vpop.f32.mrb[0].mxu0
    %1555 = vmatprep.mubr.f32.mxu0 0.0
    %1556 = vmatmul.mubr.f32.gmra.mrb[0].mxu0 %v1046
    %v1557 = vpop.f32.mrb[0].mxu0
    %v1558 = vadd.f32 %v1253, %v1557
    %v1559 = vpop.f32.mrb[0].mxu0
    %1560 = vmatprep.mubr.f32.mxu0 0.0
    %1561 = vmatmul.mubr.f32.gmra.mrb[0].mxu0 %v1047
    %v1562 = vpop.f32.mrb[0].mxu0
    %v1563 = vadd.f32 %v1258, %v1562
    %v1564 = vpop.f32.mrb[0].mxu0
    %1565 = vmatprep.mubr.f32.mxu0 0.0
    %1566 = vmatmul.mubr.f32.gmra.mrb[0].mxu0 %v1048
    %v1567 = vpop.f32.mrb[0].mxu0
    %v1568 = vadd.f32 %v1263, %v1567
    %v1569 = vpop.f32.mrb[0].mxu0
    %1570 = vmatprep.mubr.f32.mxu0 0.0
    %1571 = vmatmul.mubr.f32.gmra.mrb[0].mxu0 %v1049
    %v1572 = vpop.f32.mrb[0].mxu0
    %v1573 = vadd.f32 %v1268, %v1572
    %v1574 = vpop.f32.mrb[0].mxu0
    %1575 = vmatprep.mubr.f32.mxu0 0.0
    %1576 = vmatmul.mubr.f32.gmra.mrb[0].mxu0 %v1050
    %v1577 = vpop.f32.mrb[0].mxu0
    %v1578 = vadd.f32 %v1273, %v1577
    %v1579 = vpop.f32.mrb[0].mxu0
    %1580 = vmatprep.mubr.f32.mxu0 0.0
    %1581 = vmatmul.mubr.f32.gmra.mrb[0].mxu0 %v1051
    %v1582 = vpop.f32.mrb[0].mxu0
    %v1583 = vadd.f32 %v1278, %v1582
    %v1584 = vpop.f32.mrb[0].mxu0
    %1585 = vmatprep.mubr.f32.mxu0 0.0
    %1586 = vmatmul.mubr.f32.gmra.mrb[0].mxu0 %v1052
    %v1587 = vpop.f32.mrb[0].mxu0
    %v1588 = vadd.f32 %v1283, %v1587
    %v1589 = vpop.f32.mrb[0].mxu0
    %1590 = vmatprep.mubr.f32.mxu0 0.0
    %1591 = vmatmul.mubr.f32.gmra.mrb[0].mxu0 %v1053
    %v1592 = vpop.f32.mrb[0].mxu0
    %v1593 = vadd.f32 %v1288, %v1592
    %v1594 = vpop.f32.mrb[0].mxu0
    %1595 = vmatprep.mubr.f32.mxu0 0.0
    %1596 = vmatmul.mubr.f32.gmra.mrb[0].mxu0 %v1054
    %v1597 = vpop.f32.mrb[0].mxu0
    %v1598 = vadd.f32 %v1293, %v1597
    %v1599 = vpop.f32.mrb[0].mxu0
    %1600 = vmatprep.mubr.f32.mxu0 0.0
    %1601 = vmatmul.mubr.f32.gmra.mrb[0].mxu0 %v1055
    %v1602 = vpop.f32.mrb[0].mxu0
    %v1603 = vadd.f32 %v1298, %v1602
    %v1604 = vpop.f32.mrb[0].mxu0
    %1605 = vmatprep.mubr.f32.mxu0 0.0
    %1606 = vmatmul.mubr.f32.gmra.mrb[0].mxu0 %v1056
    %v1607 = vpop.f32.mrb[0].mxu0
    %v1608 = vadd.f32 %v1303, %v1607
    %v1609 = vpop.f32.mrb[0].mxu0
    %1610 = vmatprep.mubr.f32.mxu0 0.0
    %1611 = vmatmul.mubr.f32.gmra.mrb[0].mxu0 %v1057
    %v1612 = vpop.f32.mrb[0].mxu0
    %v1613 = vadd.f32 %v1308, %v1612
    %v1614 = vpop.f32.mrb[0].mxu0
    %1615 = vmatprep.mubr.f32.mxu0 0.0
    %1616 = vmatmul.mubr.f32.gmra.mrb[0].mxu0 %v1058
    %v1617 = vpop.f32.mrb[0].mxu0
    %v1618 = vadd.f32 %v1313, %v1617
    %v1619 = vpop.f32.mrb[0].mxu0
    %1620 = vmatprep.mubr.f32.mxu0 0.0
    %1621 = vmatmul.mubr.f32.gmra.mrb[0].mxu0 %v1059
    %v1622 = vpop.f32.mrb[0].mxu0
    %v1623 = vadd.f32 %v1318, %v1622
    %v1624 = vpop.f32.mrb[0].mxu0
    %1625 = vmatprep.mubr.f32.mxu0 0.0
    %1626 = vmatmul.mubr.f32.gmra.mrb[0].mxu0 %v1060
    %v1627 = vpop.f32.mrb[0].mxu0
    %v1628 = vadd.f32 %v1323, %v1627
    %v1629 = vpop.f32.mrb[0].mxu0
    %1630 = vmatprep.mubr.f32.mxu0 0.0
    %1631 = vmatmul.mubr.f32.gmra.mrb[0].mxu0 %v1061
    %v1632 = vpop.f32.mrb[0].mxu0
    %v1633 = vadd.f32 %v1328, %v1632
    %v1634 = vpop.f32.mrb[0].mxu0
    %1635 = vmatprep.mubr.f32.mxu0 0.0
    %1636 = vmatmul.mubr.f32.gmra.mrb[0].mxu0 %v1062
    %v1637 = vpop.f32.mrb[0].mxu0
    %v1638 = vadd.f32 %v1333, %v1637
    %v1639 = vpop.f32.mrb[0].mxu0
    %1640 = vmatprep.mubr.f32.mxu0 0.0
    %1641 = vmatmul.mubr.f32.gmra.mrb[0].mxu0 %v1063
    %v1642 = vpop.f32.mrb[0].mxu0
    %v1643 = vadd.f32 %v1338, %v1642
    %v1644 = vpop.f32.mrb[0].mxu0
    %1645 = vmatprep.mubr.f32.mxu0 0.0
    %1646 = vmatmul.mubr.f32.gmra.mrb[0].mxu0 %v1064
    %v1647 = vpop.f32.mrb[0].mxu0
    %v1648 = vadd.f32 %v1343, %v1647
    %v1649 = vpop.f32.mrb[0].mxu0
    %1650 = vmatprep.mubr.f32.mxu0 0.0
    %1651 = vmatmul.mubr.f32.gmra.mrb[0].mxu0 %v1065
    %v1652 = vpop.f32.mrb[0].mxu0
    %v1653 = vadd.f32 %v1348, %v1652
    %v1654 = vpop.f32.mrb[0].mxu0
    %1655 = vmatprep.mubr.f32.mxu0 0.0
    %1656 = vmatmul.mubr.f32.gmra.mrb[0].mxu0 %v1066
    %v1657 = vpop.f32.mrb[0].mxu0
    %v1658 = vadd.f32 %v1353, %v1657
    %v1659 = vpop.f32.mrb[0].mxu0
    %1660 = vmatprep.mubr.f32.mxu0 0.0
    %1661 = vmatmul.mubr.f32.gmra.mrb[0].mxu0 %v1067
    %v1662 = vpop.f32.mrb[0].mxu0
    %v1663 = vadd.f32 %v1358, %v1662
    %v1664 = vpop.f32.mrb[0].mxu0
    %1665 = vmatprep.mubr.f32.mxu0 0.0
    %1666 = vmatmul.mubr.f32.gmra.mrb[0].mxu0 %v1068
    %v1667 = vpop.f32.mrb[0].mxu0
    %v1668 = vadd.f32 %v1363, %v1667
    %v1669 = vpop.f32.mrb[0].mxu0
    %1670 = vmatprep.mubr.f32.mxu0 0.0
    %1671 = vmatmul.mubr.f32.gmra.mrb[0].mxu0 %v1069
    %v1672 = vpop.f32.mrb[0].mxu0
    %v1673 = vadd.f32 %v1368, %v1672
    %v1674 = vpop.f32.mrb[0].mxu0
    %1675 = vmatprep.mubr.f32.mxu0 0.0
    %1676 = vmatmul.mubr.f32.gmra.mrb[0].mxu0 %v1070
    %v1677 = vpop.f32.mrb[0].mxu0
    %v1678 = vadd.f32 %v1373, %v1677
    %v1679 = vpop.f32.mrb[0].mxu0
    %1680 = vmatprep.mubr.f32.mxu0 0.0
    %1681 = vmatmul.mubr.f32.gmra.mrb[0].mxu0 %v1071
    %v1682 = vpop.f32.mrb[0].mxu0
    %v1683 = vadd.f32 %v1378, %v1682
    %v1684 = vpop.f32.mrb[0].mxu0
    %1685 = vmatprep.mubr.f32.mxu0 0.0
    %1686 = vmatmul.mubr.f32.gmra.mrb[0].mxu0 %v1072
    %v1687 = vpop.f32.mrb[0].mxu0
    %v1688 = vadd.f32 %v1383, %v1687
    %v1689 = vpop.f32.mrb[0].mxu0
    %1690 = vmatprep.mubr.f32.mxu0 0.0
    %1691 = vmatmul.mubr.f32.gmra.mrb[0].mxu0 %v1073
    %v1692 = vpop.f32.mrb[0].mxu0
    %v1693 = vadd.f32 %v1388, %v1692
    %v1694 = vpop.f32.mrb[0].mxu0
    %1695 = vmatprep.mubr.f32.mxu0 0.0
    %1696 = vmatmul.mubr.f32.gmra.mrb[0].mxu0 %v1074
    %v1697 = vpop.f32.mrb[0].mxu0
    %v1698 = vadd.f32 %v1393, %v1697
    %v1699 = vpop.f32.mrb[0].mxu0
    %1700 = vmatprep.mubr.f32.mxu0 0.0
    %1701 = vmatmul.mubr.f32.gmra.mrb[0].mxu0 %v1075
    %v1702 = vpop.f32.mrb[0].mxu0
    %v1703 = vadd.f32 %v1398, %v1702
    %v1704 = vpop.f32.mrb[0].mxu0
    %1705 = vmatprep.mubr.f32.mxu0 0.0
    %1706 = vmatmul.mubr.f32.gmra.mrb[0].mxu0 %v1076
    %v1707 = vpop.f32.mrb[0].mxu0
    %v1708 = vadd.f32 %v1403, %v1707
    %v1709 = vpop.f32.mrb[0].mxu0
    %1710 = vmatprep.mubr.f32.mxu0 0.0
    %1711 = vmatmul.mubr.f32.gmra.mrb[0].mxu0 %v1077
    %v1712 = vpop.f32.mrb[0].mxu0
    %v1713 = vadd.f32 %v1408, %v1712
    %v1714 = vpop.f32.mrb[0].mxu0
    %1715 = vmatprep.mubr.f32.mxu0 0.0
    %1716 = vmatmul.mubr.f32.gmra.mrb[0].mxu0 %v1078
    %v1717 = vpop.f32.mrb[0].mxu0
    %v1718 = vadd.f32 %v1413, %v1717
    %v1719 = vpop.f32.mrb[0].mxu0
    %1720 = vmatprep.mubr.f32.mxu0 0.0
    %1721 = vmatmul.mubr.f32.gmra.mrb[0].mxu0 %v1079
    %v1722 = vpop.f32.mrb[0].mxu0
    %v1723 = vadd.f32 %v1418, %v1722
    %v1724 = vpop.f32.mrb[0].mxu0
    %1725 = vmatprep.mubr.f32.mxu0 0.0
    %1726 = vmatmul.mubr.f32.gmra.mrb[0].mxu0 %v1080
    %v1727 = vpop.f32.mrb[0].mxu0
    %v1728 = vadd.f32 %v1423, %v1727
    %v1729 = vpop.f32.mrb[0].mxu0
    %1730 = vmatprep.mubr.f32.mxu0 0.0
    %1731 = vmatmul.mubr.f32.gmra.mrb[0].mxu0 %v1081
    %v1732 = vpop.f32.mrb[0].mxu0
    %v1733 = vadd.f32 %v1428, %v1732
    %v1734 = vpop.f32.mrb[0].mxu0
    %1735 = vmatprep.mubr.f32.mxu0 0.0
    %1736 = vmatmul.mubr.f32.gmra.mrb[0].mxu0 %v1082
    %v1737 = vpop.f32.mrb[0].mxu0
    %v1738 = vadd.f32 %v1433, %v1737
    %v1739 = vpop.f32.mrb[0].mxu0
    %1740 = vmatprep.mubr.f32.mxu0 0.0
    %1741 = vmatmul.mubr.f32.gmra.mrb[0].mxu0 %v1083
    %v1742 = vpop.f32.mrb[0].mxu0
    %v1743 = vadd.f32 %v1438, %v1742
    %v1744 = vpop.f32.mrb[0].mxu0
    %1745 = vmatprep.mubr.f32.mxu0 0.0
    %1746 = vmatmul.mubr.f32.gmra.mrb[0].mxu0 %v1084
    %v1747 = vpop.f32.mrb[0].mxu0
    %v1748 = vadd.f32 %v1443, %v1747
    %v1749 = vpop.f32.mrb[0].mxu0
    %1750 = vmatprep.mubr.f32.mxu0 0.0
    %1751 = vmatmul.mubr.f32.gmra.mrb[0].mxu0 %v1085
    %v1752 = vpop.f32.mrb[0].mxu0
    %v1753 = vadd.f32 %v1448, %v1752
    %v1754 = vpop.f32.mrb[0].mxu0
    %1755 = vmatprep.mubr.f32.mxu0 0.0
    %1756 = vmatmul.mubr.f32.gmra.mrb[0].mxu0 %v1086
    %v1757 = vpop.f32.mrb[0].mxu0
    %v1758 = vadd.f32 %v1453, %v1757
    %v1759 = vpop.f32.mrb[0].mxu0
    %1760 = vmatprep.mubr.f32.mxu0 0.0
    %1761 = vmatmul.mubr.f32.gmra.mrb[0].mxu0 %v1087
    %v1762 = vpop.f32.mrb[0].mxu0
    %v1763 = vadd.f32 %v1458, %v1762
    %v1764 = vpop.f32.mrb[0].mxu0
    %1765 = vmatprep.mubr.f32.mxu0 0.0
    %1766 = vmatmul.mubr.f32.gmra.mrb[0].mxu0 %v1088
    %v1767 = vpop.f32.mrb[0].mxu0
    %v1768 = vadd.f32 %v1463, %v1767
    %v1769 = vpop.f32.mrb[0].mxu0
    %1770 = vmatprep.mubr.f32.mxu0 0.0
    %1771 = vmatmul.mubr.f32.gmra.mrb[0].mxu0 %v1089
    %v1772 = vpop.f32.mrb[0].mxu0
    %v1773 = vadd.f32 %v1468, %v1772
    %v1774 = vpop.f32.mrb[0].mxu0
    %1775 = vmatprep.mubr.f32.mxu0 0.0
    %1776 = vmatmul.mubr.f32.gmra.mrb[0].mxu0 %v1090
    %v1777 = vpop.f32.mrb[0].mxu0
    %v1778 = vadd.f32 %v1473, %v1777
    %v1779 = vpop.f32.mrb[0].mxu0
    %1780 = vdwg.mxu0
    %v1781 = vld [vmem:[%s6] sm:$0x1]
    %v1783 = vlaneseq
    %v1784 = vshrl.u32 %v1783, 7
    %v1785 = vsub.s32 0, %v1784
    %v1786 = vrot.slane %v1781, %v1785
    %v1788 = vadd.f32 %v1543, %v1786
    %v1789 = vadd.f32 %v1548, %v1786
    %v1790 = vadd.f32 %v1553, %v1786
    %v1791 = vadd.f32 %v1558, %v1786
    %v1792 = vadd.f32 %v1563, %v1786
    %v1793 = vadd.f32 %v1568, %v1786
    %v1794 = vadd.f32 %v1573, %v1786
    %v1795 = vadd.f32 %v1578, %v1786
    %v1796 = vadd.f32 %v1583, %v1786
    %v1797 = vadd.f32 %v1588, %v1786
    %v1798 = vadd.f32 %v1593, %v1786
    %v1799 = vadd.f32 %v1598, %v1786
    %v1800 = vadd.f32 %v1603, %v1786
    %v1801 = vadd.f32 %v1608, %v1786
    %v1802 = vadd.f32 %v1613, %v1786
    %v1803 = vadd.f32 %v1618, %v1786
    %v1804 = vadd.f32 %v1623, %v1786
    %v1805 = vadd.f32 %v1628, %v1786
    %v1806 = vadd.f32 %v1633, %v1786
    %v1807 = vadd.f32 %v1638, %v1786
    %v1808 = vadd.f32 %v1643, %v1786
    %v1809 = vadd.f32 %v1648, %v1786
    %v1810 = vadd.f32 %v1653, %v1786
    %v1811 = vadd.f32 %v1658, %v1786
    %v1812 = vadd.f32 %v1663, %v1786
    %v1813 = vadd.f32 %v1668, %v1786
    %v1814 = vadd.f32 %v1673, %v1786
    %v1815 = vadd.f32 %v1678, %v1786
    %v1816 = vadd.f32 %v1683, %v1786
    %v1817 = vadd.f32 %v1688, %v1786
    %v1818 = vadd.f32 %v1693, %v1786
    %v1819 = vadd.f32 %v1698, %v1786
    %v1820 = vadd.f32 %v1703, %v1786
    %v1821 = vadd.f32 %v1708, %v1786
    %v1822 = vadd.f32 %v1713, %v1786
    %v1823 = vadd.f32 %v1718, %v1786
    %v1824 = vadd.f32 %v1723, %v1786
    %v1825 = vadd.f32 %v1728, %v1786
    %v1826 = vadd.f32 %v1733, %v1786
    %v1827 = vadd.f32 %v1738, %v1786
    %v1828 = vadd.f32 %v1743, %v1786
    %v1829 = vadd.f32 %v1748, %v1786
    %v1830 = vadd.f32 %v1753, %v1786
    %v1831 = vadd.f32 %v1758, %v1786
    %v1832 = vadd.f32 %v1763, %v1786
    %v1833 = vadd.f32 %v1768, %v1786
    %v1834 = vadd.f32 %v1773, %v1786
    %v1835 = vadd.f32 %v1778, %v1786
    %v1836 = vmax.f32 %v1788, 0.0
    %v1837 = vmax.f32 %v1789, 0.0
    %v1838 = vmax.f32 %v1790, 0.0
    %v1839 = vmax.f32 %v1791, 0.0
    %v1840 = vmax.f32 %v1792, 0.0
    %v1841 = vmax.f32 %v1793, 0.0
    %v1842 = vmax.f32 %v1794, 0.0
    %v1843 = vmax.f32 %v1795, 0.0
    %v1844 = vmax.f32 %v1796, 0.0
    %v1845 = vmax.f32 %v1797, 0.0
    %v1846 = vmax.f32 %v1798, 0.0
    %v1847 = vmax.f32 %v1799, 0.0
    %v1848 = vmax.f32 %v1800, 0.0
    %v1849 = vmax.f32 %v1801, 0.0
    %v1850 = vmax.f32 %v1802, 0.0
    %v1851 = vmax.f32 %v1803, 0.0
    %v1852 = vmax.f32 %v1804, 0.0
    %v1853 = vmax.f32 %v1805, 0.0
    %v1854 = vmax.f32 %v1806, 0.0
    %v1855 = vmax.f32 %v1807, 0.0
    %v1856 = vmax.f32 %v1808, 0.0
    %v1857 = vmax.f32 %v1809, 0.0
    %v1858 = vmax.f32 %v1810, 0.0
    %v1859 = vmax.f32 %v1811, 0.0
    %v1860 = vmax.f32 %v1812, 0.0
    %v1861 = vmax.f32 %v1813, 0.0
    %v1862 = vmax.f32 %v1814, 0.0
    %v1863 = vmax.f32 %v1815, 0.0
    %v1864 = vmax.f32 %v1816, 0.0
    %v1865 = vmax.f32 %v1817, 0.0
    %v1866 = vmax.f32 %v1818, 0.0
    %v1867 = vmax.f32 %v1819, 0.0
    %v1868 = vmax.f32 %v1820, 0.0
    %v1869 = vmax.f32 %v1821, 0.0
    %v1870 = vmax.f32 %v1822, 0.0
    %v1871 = vmax.f32 %v1823, 0.0
    %v1872 = vmax.f32 %v1824, 0.0
    %v1873 = vmax.f32 %v1825, 0.0
    %v1874 = vmax.f32 %v1826, 0.0
    %v1875 = vmax.f32 %v1827, 0.0
    %v1876 = vmax.f32 %v1828, 0.0
    %v1877 = vmax.f32 %v1829, 0.0
    %v1878 = vmax.f32 %v1830, 0.0
    %v1879 = vmax.f32 %v1831, 0.0
    %v1880 = vmax.f32 %v1832, 0.0
    %v1881 = vmax.f32 %v1833, 0.0
    %v1882 = vmax.f32 %v1834, 0.0
    %v1883 = vmax.f32 %v1835, 0.0
    %v1884 = vld [vmem:[%s7] sm:$0x1]
    %v1885 = vld [vmem:[#allocation2] sm:$0x1]
    %1887 = vset.pattern.permute.xlu0 0
    %1888 = vperm.xlu0 %1887, %v1885
    %v1889 = vpop.permute.xlu0 %1888
    %v1891 = vlaneseq
    %v1892 = vshrl.u32 %v1891, 7
    %v1893 = vsub.s32 0, %v1892
    %v1894 = vrot.slane %v1889, %v1893
    %1895 = vmatprep.subr.mxu0 0.0
    %1896 = vmatpush1.xpose.msra.mxu0 %v1836
    %1897 = vmatprep.subr.mxu0 0.0
    %1898 = vmatpush1.xpose.msra.mxu0 %v1837
    %1899 = vmatprep.subr.mxu0 0.0
    %1900 = vmatpush1.xpose.msra.mxu0 %v1838
    %1901 = vmatprep.subr.mxu0 0.0
    %1902 = vmatpush1.xpose.msra.mxu0 %v1839
    %1903 = vmatprep.subr.mxu0 0.0
    %1904 = vmatpush1.xpose.msra.mxu0 %v1840
    %1905 = vmatprep.subr.mxu0 0.0
    %1906 = vmatpush1.xpose.msra.mxu0 %v1841
    %1907 = vmatprep.subr.mxu0 0.0
    %1908 = vmatpush1.xpose.msra.mxu0 %v1842
    %1909 = vmatprep.subr.mxu0 0.0
    %1910 = vmatpush1.xpose.msra.mxu0 %v1843
    %1911 = vmatprep.subr.mxu0 0.0
    %1912 = vmatpush1.xpose.msra.mxu0 %v1844
    %1913 = vmatprep.subr.mxu0 0.0
    %1914 = vmatpush1.xpose.msra.mxu0 %v1845
    %1915 = vmatprep.subr.mxu0 0.0
    %1916 = vmatpush1.xpose.msra.mxu0 %v1846
    %1917 = vmatprep.subr.mxu0 0.0
    %1918 = vmatpush1.xpose.msra.mxu0 %v1847
    %1919 = vmatprep.subr.mxu0 0.0
    %1920 = vmatpush1.xpose.msra.mxu0 %v1848
    %1921 = vmatprep.subr.mxu0 0.0
    %1922 = vmatpush1.xpose.msra.mxu0 %v1849
    %1923 = vmatprep.subr.mxu0 0.0
    %1924 = vmatpush1.xpose.msra.mxu0 %v1850
    %1925 = vmatprep.subr.mxu0 0.0
    %1926 = vmatpush1.xpose.msra.mxu0 %v1851
    %1927 = vmatprep.subr.mxu0 0.0
    %1928 = vmatpush1.xpose.msra.mxu0 %v1852
    %1929 = vmatprep.subr.mxu0 0.0
    %1930 = vmatpush1.xpose.msra.mxu0 %v1853
    %1931 = vmatprep.subr.mxu0 0.0
    %1932 = vmatpush1.xpose.msra.mxu0 %v1854
    %1933 = vmatprep.subr.mxu0 0.0
    %1934 = vmatpush1.xpose.msra.mxu0 %v1855
    %1935 = vmatprep.subr.mxu0 0.0
    %1936 = vmatpush1.xpose.msra.mxu0 %v1856
    %1937 = vmatprep.subr.mxu0 0.0
    %1938 = vmatpush1.xpose.msra.mxu0 %v1857
    %1939 = vmatprep.subr.mxu0 0.0
    %1940 = vmatpush1.xpose.msra.mxu0 %v1858
    %1941 = vmatprep.subr.mxu0 0.0
    %1942 = vmatpush1.xpose.msra.mxu0 %v1859
    %1943 = vmatprep.subr.mxu0 0.0
    %1944 = vmatpush1.xpose.msra.mxu0 %v1860
    %1945 = vmatprep.subr.mxu0 0.0
    %1946 = vmatpush1.xpose.msra.mxu0 %v1861
    %1947 = vmatprep.subr.mxu0 0.0
    %1948 = vmatpush1.xpose.msra.mxu0 %v1862
    %1949 = vmatprep.subr.mxu0 0.0
    %1950 = vmatpush1.xpose.msra.mxu0 %v1863
    %1951 = vmatprep.subr.mxu0 0.0
    %1952 = vmatpush1.xpose.msra.mxu0 %v1864
    %1953 = vmatprep.subr.mxu0 0.0
    %1954 = vmatpush1.xpose.msra.mxu0 %v1865
    %1955 = vmatprep.subr.mxu0 0.0
    %1956 = vmatpush1.xpose.msra.mxu0 %v1866
    %1957 = vmatprep.subr.mxu0 0.0
    %1958 = vmatpush1.xpose.msra.mxu0 %v1867
    %1959 = vmatprep.mubr.f32.mxu0 0.0
    %1960 = vmatmul.mubr.f32.gmra.mrb[0].mxu0 %v1884
    %v1961 = vpop.f32.mrb[0].mxu0
    %v1962 = vadd.f32 %v1894, %v1961
    %v1963 = vpop.f32.mrb[0].mxu0
    %v1964 = vadd.f32 %v1894, %v1963
    %1965 = vdwg.mxu0
    %1966 = vmatprep.subr.mxu0 0.0
    %1967 = vmatpush1.xpose.msra.mxu0 %v1868
    %1968 = vmatprep.subr.mxu0 0.0
    %1969 = vmatpush1.xpose.msra.mxu0 %v1869
    %1970 = vmatprep.subr.mxu0 0.0
    %1971 = vmatpush1.xpose.msra.mxu0 %v1870
    %1972 = vmatprep.subr.mxu0 0.0
    %1973 = vmatpush1.xpose.msra.mxu0 %v1871
    %1974 = vmatprep.subr.mxu0 0.0
    %1975 = vmatpush1.xpose.msra.mxu0 %v1872
    %1976 = vmatprep.subr.mxu0 0.0
    %1977 = vmatpush1.xpose.msra.mxu0 %v1873
    %1978 = vmatprep.subr.mxu0 0.0
    %1979 = vmatpush1.xpose.msra.mxu0 %v1874
    %1980 = vmatprep.subr.mxu0 0.0
    %1981 = vmatpush1.xpose.msra.mxu0 %v1875
    %1982 = vmatprep.subr.mxu0 0.0
    %1983 = vmatpush1.xpose.msra.mxu0 %v1876
    %1984 = vmatprep.subr.mxu0 0.0
    %1985 = vmatpush1.xpose.msra.mxu0 %v1877
    %1986 = vmatprep.subr.mxu0 0.0
    %1987 = vmatpush1.xpose.msra.mxu0 %v1878
    %1988 = vmatprep.subr.mxu0 0.0
    %1989 = vmatpush1.xpose.msra.mxu0 %v1879
    %1990 = vmatprep.subr.mxu0 0.0
    %1991 = vmatpush1.xpose.msra.mxu0 %v1880
    %1992 = vmatprep.subr.mxu0 0.0
    %1993 = vmatpush1.xpose.msra.mxu0 %v1881
    %1994 = vmatprep.subr.mxu0 0.0
    %1995 = vmatpush1.xpose.msra.mxu0 %v1882
    %1996 = vmatprep.subr.mxu0 0.0
    %1997 = vmatpush1.xpose.msra.mxu0 %v1883
    %1998 = vmatprep.subr.mxu0 0.0
    %1999 = vmatpush1.xpose.msra.mxu0 0.0
    %2000 = vmatprep.subr.mxu0 0.0
    %2001 = vmatpush1.xpose.msra.mxu0 0.0
    %2002 = vmatprep.subr.mxu0 0.0
    %2003 = vmatpush1.xpose.msra.mxu0 0.0
    %2004 = vmatprep.subr.mxu0 0.0
    %2005 = vmatpush1.xpose.msra.mxu0 0.0
    %2006 = vmatprep.subr.mxu0 0.0
    %2007 = vmatpush1.xpose.msra.mxu0 0.0
    %2008 = vmatprep.subr.mxu0 0.0
    %2009 = vmatpush1.xpose.msra.mxu0 0.0
    %2010 = vmatprep.subr.mxu0 0.0
    %2011 = vmatpush1.xpose.msra.mxu0 0.0
    %2012 = vmatprep.subr.mxu0 0.0
    %2013 = vmatpush1.xpose.msra.mxu0 0.0
    %2014 = vmatprep.subr.mxu0 0.0
    %2015 = vmatpush1.xpose.msra.mxu0 0.0
    %2016 = vmatprep.subr.mxu0 0.0
    %2017 = vmatpush1.xpose.msra.mxu0 0.0
    %2018 = vmatprep.subr.mxu0 0.0
    %2019 = vmatpush1.xpose.msra.mxu0 0.0
    %2020 = vmatprep.subr.mxu0 0.0
    %2021 = vmatpush1.xpose.msra.mxu0 0.0
    %2022 = vmatprep.subr.mxu0 0.0
    %2023 = vmatpush1.xpose.msra.mxu0 0.0
    %2024 = vmatprep.subr.mxu0 0.0
    %2025 = vmatpush1.xpose.msra.mxu0 0.0
    %2026 = vmatprep.subr.mxu0 0.0
    %2027 = vmatpush1.xpose.msra.mxu0 0.0
    %2028 = vmatprep.subr.mxu0 0.0
    %2029 = vmatpush1.xpose.msra.mxu0 0.0
    %2030 = vmatprep.mubr.f32.mxu0 0.0
    %2031 = vmatmul.mubr.f32.gmra.mrb[0].mxu0 %v1884
    %v2032 = vpop.f32.mrb[0].mxu0
    %v2033 = vadd.f32 %v1894, %v2032
    %v2034 = vpop.f32.mrb[0].mxu0
    %2035 = vdwg.mxu0
    %v2039 = vcombine.low %v1962, %v1964
    %v2041 = vunpack.c.l.s4 1966171168
    %v2042 = vunpack.c.0.s8 %v2041
    %v2043 = vlaneseq
    %v2044 = vshrl.u32 %v2043, 7
    %v2045 = vsub.s32 %v2042, %v2044
    %v2046 = vrot.slane %v2039, %v2045
    %v2048 = vunpack.c.l.s4 1966171168
    %v2049 = vunpack.c.0.s8 %v2048
    %v2050 = vlaneseq
    %v2051 = vshrl.u32 %v2050, 7
    %v2052 = vsub.s32 %v2049, %v2051
    %v2053 = vrot.slane %v2033, %v2052
    %v2054 = vcombine.low %v2046, %v2053
    %v2056 = vunpack.c.l.s4 1966171168
    %v2057 = vunpack.c.0.s8 %v2056
    %v2058 = vlaneseq
    %v2059 = vshrl.u32 %v2058, 7
    %v2060 = vsub.s32 %v2057, %v2059
    %v2061 = vrot.slane %v2054, %v2060
    %v2063 = vlaneseq
    %vm2064 = vcmp.ge.s32.totalorder %v2063, 0
    %vm2065 = vcmp.lt.s32.totalorder %v2063, 384
    %vm2066 = vmand %vm2064, %vm2065
    %2067 = vst.msk [vmem:[#allocation3] sm:$0x7] %vm2066, %v2061
    // Predicated region
    $region38: #{tpu_custom_call.1} parent=1 // pred_check
      _
    $region39: #{tpu_custom_call.1} parent=1 // pred_check_branch
      %2069 = sbr.rel (0) target = $region41
    $region40: #{tpu_custom_call.1} parent=1 // pred_region
      %s2071 = ssub.s32 48, 48
      %2072 = vsyncadd [#allocation4], %s2071
      %s2074 = sshll.u32 [#allocation3], 4
      %s2075 = int_to_ptr.vmem [resolvable:$true] %s2074
      %2077 = dma.vmem_to_hbm [thread:$0]  %s2075, 48, %s9, [#allocation4]
    $region41: #{tpu_custom_call.1} parent=1 // pred_fallthru
      _
    // Predicated region
    $region42: #{tpu_custom_call.1} parent=1 // pred_check
      _
    $region43: #{tpu_custom_call.1} parent=1 // pred_check_branch
      %2079 = sbr.rel (0) target = $region45
    $region44: #{tpu_custom_call.1} parent=1 // pred_region
      %2080 = dma.done [#allocation4], 48
    $region45: #{tpu_custom_call.1} parent=1 // pred_fallthru
      _
    %2081 = vsyncpa [#allocation4], 1

</llo_original>
